<compile_context>
chip_gen: v5e
topology: v5e:2x2
jax: 0.10.0
libtpu: 0.0.40
codegen_flags: <defaults>
</compile_context>

<pallas_src>
import jax
import jax.numpy as jnp
from jax.experimental import pallas as pl
from jax.experimental.pallas import tpu as pltpu

# ----- problem sizes (small, consistent with the module) -----
B = 2          # batch
T = 8          # sequence length
I = 4          # input_size
H = 32         # hidden_size
L = 2          # num_stacked_layers


def lstm_kernel(x_ref,                        # (T*B, I)   time-major rows, f32
                wih0_ref, whh0_ref, b0_ref,   # (I, 4H) bf16, (H, 4H) bf16, (1, 4H) f32
                wih1_ref, whh1_ref, b1_ref,   # (H, 4H) bf16, (H, 4H) bf16, (1, 4H) f32
                fcw_ref, fcb_ref,             # (1, H) f32, (1, 1) f32
                out_ref):                     # (B, 1) f32
    f32 = jnp.float32
    bf16 = jnp.bfloat16

    def cell(gx, h, c, whh_bf16):
        """One LSTM cell step. gx: (B,4H) f32 precomputed input proj + bias."""
        gates = gx + jnp.dot(h.astype(bf16), whh_bf16,
                             preferred_element_type=f32)             # (B, 4H) f32
        # Activations on the full gates tile (one sigmoid + one tanh EUP push),
        # then static lane slices into i/f/g/o.
        s = jax.nn.sigmoid(gates)
        th = jnp.tanh(gates)
        i_g = s[:, 0 * H:1 * H]
        f_g = s[:, 1 * H:2 * H]
        g_g = th[:, 2 * H:3 * H]
        o_g = s[:, 3 * H:4 * H]
        c_new = f_g * c + i_g * g_g
        h_new = o_g * jnp.tanh(c_new)
        return h_new, c_new

    # ---- Layer 0: hoisted input projection (bias folded in), single bf16 matmul ----
    gx0 = (jnp.dot(x_ref[...].astype(bf16), wih0_ref[...],
                   preferred_element_type=f32) + b0_ref[...])          # (T*B, 4H) f32

    whh0 = whh0_ref[...]          # (H, 4H) bf16, live across the whole loop
    whh1 = whh1_ref[...]
    wih1 = wih1_ref[...]
    b1 = b1_ref[...]

    h0 = jnp.zeros((B, H), f32)
    c0 = jnp.zeros((B, H), f32)
    h1 = jnp.zeros((B, H), f32)
    c1 = jnp.zeros((B, H), f32)

    # ---- Wavefront over time: stage 0 = layer-0 step 0; stage t runs layer-1 step
    # t-1 (consumes the h0 produced at stage t-1) together with layer-0 step t.
    # The two matmuls in a stage are independent -> scheduler keeps both in flight,
    # so the dependent chain is ~T+1 cells instead of ~2T.
    h0, c0 = cell(gx0[0:B, :], h0, c0, whh0)                          # layer-0, t=0
    for t in range(1, T):
        g1 = (jnp.dot(h0.astype(bf16), wih1, preferred_element_type=f32) + b1)
        h1, c1 = cell(g1, h1, c1, whh1)                               # layer-1, t-1
        h0, c0 = cell(gx0[t * B:(t + 1) * B, :], h0, c0, whh0)        # layer-0, t
    g1 = (jnp.dot(h0.astype(bf16), wih1, preferred_element_type=f32) + b1)
    h1, c1 = cell(g1, h1, c1, whh1)                                   # layer-1, T-1

    # ---- Final Linear(H, 1): VPU multiply + lane-sum reduction (keep off the MXU) ----
    out_ref[...] = (jnp.sum(h1 * fcw_ref[...], axis=-1, keepdims=True)
                    + fcb_ref[...])                                   # (B, 1)


def lstm_forward(x, params):
    """x: (B, T, I) batch_first like PyTorch. Returns (B, 1) f32."""
    (wih0, whh0, b0, wih1, whh1, b1, fcw, fcb) = params
    # One-time host-side transpose+reshape to time-major rows (row = t*B + b).
    x_tm = jnp.transpose(x, (1, 0, 2)).reshape(T * B, I)
    vmem = pl.BlockSpec(memory_space=pltpu.MemorySpace.VMEM)
    return pl.pallas_call(
        lstm_kernel,
        out_shape=jax.ShapeDtypeStruct((B, 1), jnp.float32),
        in_specs=[vmem] * 9,
        out_specs=vmem,
    )(x_tm, wih0, whh0, b0, wih1, whh1, b1, fcw, fcb)


# ---------------- deterministic parameter init (PyTorch-style U(-k, k), k = 1/sqrt(H)) ----
def init_params(key):
    k = 1.0 / jnp.sqrt(jnp.float32(H))
    keys = jax.random.split(key, 10)

    def u(kk, shape):
        return jax.random.uniform(kk, shape, jnp.float32, -k, k)

    # layer 0: W_ih (4H, I), W_hh (4H, H), bias = b_ih + b_hh (4H,)
    wih0 = u(keys[0], (4 * H, I)); whh0 = u(keys[1], (4 * H, H))
    b0 = u(keys[2], (4 * H,)) + u(keys[3], (4 * H,))
    # layer 1: input dim = H
    wih1 = u(keys[4], (4 * H, H)); whh1 = u(keys[5], (4 * H, H))
    b1 = u(keys[6], (4 * H,)) + u(keys[7], (4 * H,))
    # fc: weight (1, H), bias (1,)
    fcw = u(keys[8], (1, H)); fcb = u(keys[9], (1,))

    bf16 = jnp.bfloat16
    # Pre-transpose to (in_dim, 4H) and pre-cast MXU weights to bf16 host-side
    # (halves the weight DMA bytes; accumulation stays f32 in-kernel).
    packed = (wih0.T.astype(bf16), whh0.T.astype(bf16), b0.reshape(1, 4 * H),
              wih1.T.astype(bf16), whh1.T.astype(bf16), b1.reshape(1, 4 * H),
              fcw, fcb.reshape(1, 1))
    raw = (wih0, whh0, b0, wih1, whh1, b1, fcw, fcb)
    return packed, raw


# ---------------- pure-JAX f32 reference (matches PyTorch nn.LSTM semantics) ----------------
def reference(x, raw):
    wih0, whh0, b0, wih1, whh1, b1, fcw, fcb = raw
    P = jax.lax.Precision.HIGHEST   # pinned f32 matmuls

    def layer(xs, wih, whh, b):
        h = jnp.zeros((B, H)); c = jnp.zeros((B, H))
        outs = []
        for t in range(T):
            g = (jnp.dot(xs[t], wih.T, precision=P)
                 + jnp.dot(h, whh.T, precision=P) + b)
            i_g = jax.nn.sigmoid(g[:, :H]); f_g = jax.nn.sigmoid(g[:, H:2 * H])
            g_g = jnp.tanh(g[:, 2 * H:3 * H]); o_g = jax.nn.sigmoid(g[:, 3 * H:])
            c = f_g * c + i_g * g_g
            h = o_g * jnp.tanh(c)
            outs.append(h)
        return outs

    s0 = layer([x[:, t, :] for t in range(T)], wih0, whh0, b0)
    s1 = layer(s0, wih1, whh1, b1)
    return jnp.dot(s1[-1], fcw.T, precision=P) + fcb


if __name__ == "__main__":
    key = jax.random.PRNGKey(0)
    kx, kp = jax.random.split(key)
    x = jax.random.normal(kx, (B, T, I), jnp.float32)
    params, raw = init_params(kp)

    out = jax.block_until_ready(lstm_forward(x, params))
    ref = reference(x, raw)

    assert out.shape == (B, 1)
    # bf16 MXU inputs on a T-step recurrence: validate at ~1e-2 (kernel elementwise
    # math and accumulation are still f32; structural semantics match the reference).
    assert jnp.allclose(out, ref, atol=1e-2, rtol=1e-2), (out, ref)
    print("KERNEL_OK")
</pallas_src>

<mosaic_0001>
module attributes {stable_mosaic.version = 11 : i64} {
  func.func @lstm_kernel(%arg0: memref<16x4xf32, #tpu.memory_space<vmem>>, %arg1: memref<4x128xbf16, #tpu.memory_space<vmem>>, %arg2: memref<32x128xbf16, #tpu.memory_space<vmem>>, %arg3: memref<1x128xf32, #tpu.memory_space<vmem>>, %arg4: memref<32x128xbf16, #tpu.memory_space<vmem>>, %arg5: memref<32x128xbf16, #tpu.memory_space<vmem>>, %arg6: memref<1x128xf32, #tpu.memory_space<vmem>>, %arg7: memref<1x32xf32, #tpu.memory_space<vmem>>, %arg8: memref<1x1xf32, #tpu.memory_space<vmem>>, %arg9: memref<2x1xf32, #tpu.memory_space<vmem>>) attributes {dimension_semantics = [], scalar_prefetch = 0 : i64, scratch_operands = 0 : i64, tpu.core_type = #tpu.core_type<tc>} {
    %c0 = arith.constant 0 : index
    %c0_0 = arith.constant 0 : index
    %0 = vector.load %arg0[%c0, %c0_0] : memref<16x4xf32, #tpu.memory_space<vmem>>, vector<16x4xf32>
    %1 = arith.truncf %0 : vector<16x4xf32> to vector<16x4xbf16>
    %c0_1 = arith.constant 0 : index
    %c0_2 = arith.constant 0 : index
    %2 = vector.load %arg1[%c0_1, %c0_2] : memref<4x128xbf16, #tpu.memory_space<vmem>>, vector<4x128xbf16>
    %cst = arith.constant dense<0.000000e+00> : vector<16x128xf32>
    %3 = tpu.matmul %1, %2, %cst {dimension_numbers = #tpu.dot_dimension_numbers<[1], [0], [0], [1], [0, 0, 1, 1], [], []>} : vector<16x4xbf16>, vector<4x128xbf16>, vector<16x128xf32> -> vector<16x128xf32>
    %c0_3 = arith.constant 0 : index
    %c0_4 = arith.constant 0 : index
    %4 = vector.load %arg3[%c0_3, %c0_4] : memref<1x128xf32, #tpu.memory_space<vmem>>, vector<1x128xf32>
    %5 = vector.broadcast %4 : vector<1x128xf32> to vector<16x128xf32>
    %6 = arith.addf %3, %5 : vector<16x128xf32>
    %c0_5 = arith.constant 0 : index
    %c0_6 = arith.constant 0 : index
    %7 = vector.load %arg2[%c0_5, %c0_6] : memref<32x128xbf16, #tpu.memory_space<vmem>>, vector<32x128xbf16>
    %c0_7 = arith.constant 0 : index
    %c0_8 = arith.constant 0 : index
    %8 = vector.load %arg5[%c0_7, %c0_8] : memref<32x128xbf16, #tpu.memory_space<vmem>>, vector<32x128xbf16>
    %c0_9 = arith.constant 0 : index
    %c0_10 = arith.constant 0 : index
    %9 = vector.load %arg4[%c0_9, %c0_10] : memref<32x128xbf16, #tpu.memory_space<vmem>>, vector<32x128xbf16>
    %c0_11 = arith.constant 0 : index
    %c0_12 = arith.constant 0 : index
    %10 = vector.load %arg6[%c0_11, %c0_12] : memref<1x128xf32, #tpu.memory_space<vmem>>, vector<1x128xf32>
    %cst_13 = arith.constant 0.000000e+00 : f32
    %11 = vector.broadcast %cst_13 : f32 to vector<2x32xf32>
    %cst_14 = arith.constant 0.000000e+00 : f32
    %12 = vector.broadcast %cst_14 : f32 to vector<2x32xf32>
    %cst_15 = arith.constant 0.000000e+00 : f32
    %13 = vector.broadcast %cst_15 : f32 to vector<2x32xf32>
    %cst_16 = arith.constant 0.000000e+00 : f32
    %14 = vector.broadcast %cst_16 : f32 to vector<2x32xf32>
    %15 = vector.extract_strided_slice %6 {offsets = [0, 0], sizes = [2, 128], strides = [1, 1]} : vector<16x128xf32> to vector<2x128xf32>
    %16 = arith.truncf %11 : vector<2x32xf32> to vector<2x32xbf16>
    %cst_17 = arith.constant dense<0.000000e+00> : vector<2x128xf32>
    %17 = tpu.matmul %16, %7, %cst_17 {dimension_numbers = #tpu.dot_dimension_numbers<[1], [0], [0], [1], [0, 0, 1, 1], [], []>} : vector<2x32xbf16>, vector<32x128xbf16>, vector<2x128xf32> -> vector<2x128xf32>
    %18 = arith.addf %15, %17 : vector<2x128xf32>
    %19 = arith.negf %18 : vector<2x128xf32>
    %20 = math.exp %19 : vector<2x128xf32>
    %cst_18 = arith.constant 1.000000e+00 : f32
    %21 = vector.broadcast %cst_18 : f32 to vector<2x128xf32>
    %22 = arith.addf %21, %20 : vector<2x128xf32>
    %23 = arith.divf %21, %22 : vector<2x128xf32>
    %24 = math.tanh %18 : vector<2x128xf32>
    %25 = vector.extract_strided_slice %23 {offsets = [0, 0], sizes = [2, 32], strides = [1, 1]} : vector<2x128xf32> to vector<2x32xf32>
    %26 = vector.extract_strided_slice %23 {offsets = [0, 32], sizes = [2, 32], strides = [1, 1]} : vector<2x128xf32> to vector<2x32xf32>
    %27 = vector.extract_strided_slice %24 {offsets = [0, 64], sizes = [2, 32], strides = [1, 1]} : vector<2x128xf32> to vector<2x32xf32>
    %28 = vector.extract_strided_slice %23 {offsets = [0, 96], sizes = [2, 32], strides = [1, 1]} : vector<2x128xf32> to vector<2x32xf32>
    %29 = arith.mulf %26, %12 : vector<2x32xf32>
    %30 = arith.mulf %25, %27 : vector<2x32xf32>
    %31 = arith.addf %29, %30 : vector<2x32xf32>
    %32 = math.tanh %31 : vector<2x32xf32>
    %33 = arith.mulf %28, %32 : vector<2x32xf32>
    %34 = arith.truncf %33 : vector<2x32xf32> to vector<2x32xbf16>
    %cst_19 = arith.constant dense<0.000000e+00> : vector<2x128xf32>
    %35 = tpu.matmul %34, %9, %cst_19 {dimension_numbers = #tpu.dot_dimension_numbers<[1], [0], [0], [1], [0, 0, 1, 1], [], []>} : vector<2x32xbf16>, vector<32x128xbf16>, vector<2x128xf32> -> vector<2x128xf32>
    %36 = vector.broadcast %10 : vector<1x128xf32> to vector<2x128xf32>
    %37 = arith.addf %35, %36 : vector<2x128xf32>
    %38 = arith.truncf %13 : vector<2x32xf32> to vector<2x32xbf16>
    %cst_20 = arith.constant dense<0.000000e+00> : vector<2x128xf32>
    %39 = tpu.matmul %38, %8, %cst_20 {dimension_numbers = #tpu.dot_dimension_numbers<[1], [0], [0], [1], [0, 0, 1, 1], [], []>} : vector<2x32xbf16>, vector<32x128xbf16>, vector<2x128xf32> -> vector<2x128xf32>
    %40 = arith.addf %37, %39 : vector<2x128xf32>
    %41 = arith.negf %40 : vector<2x128xf32>
    %42 = math.exp %41 : vector<2x128xf32>
    %cst_21 = arith.constant 1.000000e+00 : f32
    %43 = vector.broadcast %cst_21 : f32 to vector<2x128xf32>
    %44 = arith.addf %43, %42 : vector<2x128xf32>
    %45 = arith.divf %43, %44 : vector<2x128xf32>
    %46 = math.tanh %40 : vector<2x128xf32>
    %47 = vector.extract_strided_slice %45 {offsets = [0, 0], sizes = [2, 32], strides = [1, 1]} : vector<2x128xf32> to vector<2x32xf32>
    %48 = vector.extract_strided_slice %45 {offsets = [0, 32], sizes = [2, 32], strides = [1, 1]} : vector<2x128xf32> to vector<2x32xf32>
    %49 = vector.extract_strided_slice %46 {offsets = [0, 64], sizes = [2, 32], strides = [1, 1]} : vector<2x128xf32> to vector<2x32xf32>
    %50 = vector.extract_strided_slice %45 {offsets = [0, 96], sizes = [2, 32], strides = [1, 1]} : vector<2x128xf32> to vector<2x32xf32>
    %51 = arith.mulf %48, %14 : vector<2x32xf32>
    %52 = arith.mulf %47, %49 : vector<2x32xf32>
    %53 = arith.addf %51, %52 : vector<2x32xf32>
    %54 = math.tanh %53 : vector<2x32xf32>
    %55 = arith.mulf %50, %54 : vector<2x32xf32>
    %56 = vector.extract_strided_slice %6 {offsets = [2, 0], sizes = [2, 128], strides = [1, 1]} : vector<16x128xf32> to vector<2x128xf32>
    %57 = arith.truncf %33 : vector<2x32xf32> to vector<2x32xbf16>
    %cst_22 = arith.constant dense<0.000000e+00> : vector<2x128xf32>
    %58 = tpu.matmul %57, %7, %cst_22 {dimension_numbers = #tpu.dot_dimension_numbers<[1], [0], [0], [1], [0, 0, 1, 1], [], []>} : vector<2x32xbf16>, vector<32x128xbf16>, vector<2x128xf32> -> vector<2x128xf32>
    %59 = arith.addf %56, %58 : vector<2x128xf32>
    %60 = arith.negf %59 : vector<2x128xf32>
    %61 = math.exp %60 : vector<2x128xf32>
    %cst_23 = arith.constant 1.000000e+00 : f32
    %62 = vector.broadcast %cst_23 : f32 to vector<2x128xf32>
    %63 = arith.addf %62, %61 : vector<2x128xf32>
    %64 = arith.divf %62, %63 : vector<2x128xf32>
    %65 = math.tanh %59 : vector<2x128xf32>
    %66 = vector.extract_strided_slice %64 {offsets = [0, 0], sizes = [2, 32], strides = [1, 1]} : vector<2x128xf32> to vector<2x32xf32>
    %67 = vector.extract_strided_slice %64 {offsets = [0, 32], sizes = [2, 32], strides = [1, 1]} : vector<2x128xf32> to vector<2x32xf32>
    %68 = vector.extract_strided_slice %65 {offsets = [0, 64], sizes = [2, 32], strides = [1, 1]} : vector<2x128xf32> to vector<2x32xf32>
    %69 = vector.extract_strided_slice %64 {offsets = [0, 96], sizes = [2, 32], strides = [1, 1]} : vector<2x128xf32> to vector<2x32xf32>
    %70 = arith.mulf %67, %31 : vector<2x32xf32>
    %71 = arith.mulf %66, %68 : vector<2x32xf32>
    %72 = arith.addf %70, %71 : vector<2x32xf32>
    %73 = math.tanh %72 : vector<2x32xf32>
    %74 = arith.mulf %69, %73 : vector<2x32xf32>
    %75 = arith.truncf %74 : vector<2x32xf32> to vector<2x32xbf16>
    %cst_24 = arith.constant dense<0.000000e+00> : vector<2x128xf32>
    %76 = tpu.matmul %75, %9, %cst_24 {dimension_numbers = #tpu.dot_dimension_numbers<[1], [0], [0], [1], [0, 0, 1, 1], [], []>} : vector<2x32xbf16>, vector<32x128xbf16>, vector<2x128xf32> -> vector<2x128xf32>
    %77 = vector.broadcast %10 : vector<1x128xf32> to vector<2x128xf32>
    %78 = arith.addf %76, %77 : vector<2x128xf32>
    %79 = arith.truncf %55 : vector<2x32xf32> to vector<2x32xbf16>
    %cst_25 = arith.constant dense<0.000000e+00> : vector<2x128xf32>
    %80 = tpu.matmul %79, %8, %cst_25 {dimension_numbers = #tpu.dot_dimension_numbers<[1], [0], [0], [1], [0, 0, 1, 1], [], []>} : vector<2x32xbf16>, vector<32x128xbf16>, vector<2x128xf32> -> vector<2x128xf32>
    %81 = arith.addf %78, %80 : vector<2x128xf32>
    %82 = arith.negf %81 : vector<2x128xf32>
    %83 = math.exp %82 : vector<2x128xf32>
    %cst_26 = arith.constant 1.000000e+00 : f32
    %84 = vector.broadcast %cst_26 : f32 to vector<2x128xf32>
    %85 = arith.addf %84, %83 : vector<2x128xf32>
    %86 = arith.divf %84, %85 : vector<2x128xf32>
    %87 = math.tanh %81 : vector<2x128xf32>
    %88 = vector.extract_strided_slice %86 {offsets = [0, 0], sizes = [2, 32], strides = [1, 1]} : vector<2x128xf32> to vector<2x32xf32>
    %89 = vector.extract_strided_slice %86 {offsets = [0, 32], sizes = [2, 32], strides = [1, 1]} : vector<2x128xf32> to vector<2x32xf32>
    %90 = vector.extract_strided_slice %87 {offsets = [0, 64], sizes = [2, 32], strides = [1, 1]} : vector<2x128xf32> to vector<2x32xf32>
    %91 = vector.extract_strided_slice %86 {offsets = [0, 96], sizes = [2, 32], strides = [1, 1]} : vector<2x128xf32> to vector<2x32xf32>
    %92 = arith.mulf %89, %53 : vector<2x32xf32>
    %93 = arith.mulf %88, %90 : vector<2x32xf32>
    %94 = arith.addf %92, %93 : vector<2x32xf32>
    %95 = math.tanh %94 : vector<2x32xf32>
    %96 = arith.mulf %91, %95 : vector<2x32xf32>
    %97 = vector.extract_strided_slice %6 {offsets = [4, 0], sizes = [2, 128], strides = [1, 1]} : vector<16x128xf32> to vector<2x128xf32>
    %98 = arith.truncf %74 : vector<2x32xf32> to vector<2x32xbf16>
    %cst_27 = arith.constant dense<0.000000e+00> : vector<2x128xf32>
    %99 = tpu.matmul %98, %7, %cst_27 {dimension_numbers = #tpu.dot_dimension_numbers<[1], [0], [0], [1], [0, 0, 1, 1], [], []>} : vector<2x32xbf16>, vector<32x128xbf16>, vector<2x128xf32> -> vector<2x128xf32>
    %100 = arith.addf %97, %99 : vector<2x128xf32>
    %101 = arith.negf %100 : vector<2x128xf32>
    %102 = math.exp %101 : vector<2x128xf32>
    %cst_28 = arith.constant 1.000000e+00 : f32
    %103 = vector.broadcast %cst_28 : f32 to vector<2x128xf32>
    %104 = arith.addf %103, %102 : vector<2x128xf32>
    %105 = arith.divf %103, %104 : vector<2x128xf32>
    %106 = math.tanh %100 : vector<2x128xf32>
    %107 = vector.extract_strided_slice %105 {offsets = [0, 0], sizes = [2, 32], strides = [1, 1]} : vector<2x128xf32> to vector<2x32xf32>
    %108 = vector.extract_strided_slice %105 {offsets = [0, 32], sizes = [2, 32], strides = [1, 1]} : vector<2x128xf32> to vector<2x32xf32>
    %109 = vector.extract_strided_slice %106 {offsets = [0, 64], sizes = [2, 32], strides = [1, 1]} : vector<2x128xf32> to vector<2x32xf32>
    %110 = vector.extract_strided_slice %105 {offsets = [0, 96], sizes = [2, 32], strides = [1, 1]} : vector<2x128xf32> to vector<2x32xf32>
    %111 = arith.mulf %108, %72 : vector<2x32xf32>
    %112 = arith.mulf %107, %109 : vector<2x32xf32>
    %113 = arith.addf %111, %112 : vector<2x32xf32>
    %114 = math.tanh %113 : vector<2x32xf32>
    %115 = arith.mulf %110, %114 : vector<2x32xf32>
    %116 = arith.truncf %115 : vector<2x32xf32> to vector<2x32xbf16>
    %cst_29 = arith.constant dense<0.000000e+00> : vector<2x128xf32>
    %117 = tpu.matmul %116, %9, %cst_29 {dimension_numbers = #tpu.dot_dimension_numbers<[1], [0], [0], [1], [0, 0, 1, 1], [], []>} : vector<2x32xbf16>, vector<32x128xbf16>, vector<2x128xf32> -> vector<2x128xf32>
    %118 = vector.broadcast %10 : vector<1x128xf32> to vector<2x128xf32>
    %119 = arith.addf %117, %118 : vector<2x128xf32>
    %120 = arith.truncf %96 : vector<2x32xf32> to vector<2x32xbf16>
    %cst_30 = arith.constant dense<0.000000e+00> : vector<2x128xf32>
    %121 = tpu.matmul %120, %8, %cst_30 {dimension_numbers = #tpu.dot_dimension_numbers<[1], [0], [0], [1], [0, 0, 1, 1], [], []>} : vector<2x32xbf16>, vector<32x128xbf16>, vector<2x128xf32> -> vector<2x128xf32>
    %122 = arith.addf %119, %121 : vector<2x128xf32>
    %123 = arith.negf %122 : vector<2x128xf32>
    %124 = math.exp %123 : vector<2x128xf32>
    %cst_31 = arith.constant 1.000000e+00 : f32
    %125 = vector.broadcast %cst_31 : f32 to vector<2x128xf32>
    %126 = arith.addf %125, %124 : vector<2x128xf32>
    %127 = arith.divf %125, %126 : vector<2x128xf32>
    %128 = math.tanh %122 : vector<2x128xf32>
    %129 = vector.extract_strided_slice %127 {offsets = [0, 0], sizes = [2, 32], strides = [1, 1]} : vector<2x128xf32> to vector<2x32xf32>
    %130 = vector.extract_strided_slice %127 {offsets = [0, 32], sizes = [2, 32], strides = [1, 1]} : vector<2x128xf32> to vector<2x32xf32>
    %131 = vector.extract_strided_slice %128 {offsets = [0, 64], sizes = [2, 32], strides = [1, 1]} : vector<2x128xf32> to vector<2x32xf32>
    %132 = vector.extract_strided_slice %127 {offsets = [0, 96], sizes = [2, 32], strides = [1, 1]} : vector<2x128xf32> to vector<2x32xf32>
    %133 = arith.mulf %130, %94 : vector<2x32xf32>
    %134 = arith.mulf %129, %131 : vector<2x32xf32>
    %135 = arith.addf %133, %134 : vector<2x32xf32>
    %136 = math.tanh %135 : vector<2x32xf32>
    %137 = arith.mulf %132, %136 : vector<2x32xf32>
    %138 = vector.extract_strided_slice %6 {offsets = [6, 0], sizes = [2, 128], strides = [1, 1]} : vector<16x128xf32> to vector<2x128xf32>
    %139 = arith.truncf %115 : vector<2x32xf32> to vector<2x32xbf16>
    %cst_32 = arith.constant dense<0.000000e+00> : vector<2x128xf32>
    %140 = tpu.matmul %139, %7, %cst_32 {dimension_numbers = #tpu.dot_dimension_numbers<[1], [0], [0], [1], [0, 0, 1, 1], [], []>} : vector<2x32xbf16>, vector<32x128xbf16>, vector<2x128xf32> -> vector<2x128xf32>
    %141 = arith.addf %138, %140 : vector<2x128xf32>
    %142 = arith.negf %141 : vector<2x128xf32>
    %143 = math.exp %142 : vector<2x128xf32>
    %cst_33 = arith.constant 1.000000e+00 : f32
    %144 = vector.broadcast %cst_33 : f32 to vector<2x128xf32>
    %145 = arith.addf %144, %143 : vector<2x128xf32>
    %146 = arith.divf %144, %145 : vector<2x128xf32>
    %147 = math.tanh %141 : vector<2x128xf32>
    %148 = vector.extract_strided_slice %146 {offsets = [0, 0], sizes = [2, 32], strides = [1, 1]} : vector<2x128xf32> to vector<2x32xf32>
    %149 = vector.extract_strided_slice %146 {offsets = [0, 32], sizes = [2, 32], strides = [1, 1]} : vector<2x128xf32> to vector<2x32xf32>
    %150 = vector.extract_strided_slice %147 {offsets = [0, 64], sizes = [2, 32], strides = [1, 1]} : vector<2x128xf32> to vector<2x32xf32>
    %151 = vector.extract_strided_slice %146 {offsets = [0, 96], sizes = [2, 32], strides = [1, 1]} : vector<2x128xf32> to vector<2x32xf32>
    %152 = arith.mulf %149, %113 : vector<2x32xf32>
    %153 = arith.mulf %148, %150 : vector<2x32xf32>
    %154 = arith.addf %152, %153 : vector<2x32xf32>
    %155 = math.tanh %154 : vector<2x32xf32>
    %156 = arith.mulf %151, %155 : vector<2x32xf32>
    %157 = arith.truncf %156 : vector<2x32xf32> to vector<2x32xbf16>
    %cst_34 = arith.constant dense<0.000000e+00> : vector<2x128xf32>
    %158 = tpu.matmul %157, %9, %cst_34 {dimension_numbers = #tpu.dot_dimension_numbers<[1], [0], [0], [1], [0, 0, 1, 1], [], []>} : vector<2x32xbf16>, vector<32x128xbf16>, vector<2x128xf32> -> vector<2x128xf32>
    %159 = vector.broadcast %10 : vector<1x128xf32> to vector<2x128xf32>
    %160 = arith.addf %158, %159 : vector<2x128xf32>
    %161 = arith.truncf %137 : vector<2x32xf32> to vector<2x32xbf16>
    %cst_35 = arith.constant dense<0.000000e+00> : vector<2x128xf32>
    %162 = tpu.matmul %161, %8, %cst_35 {dimension_numbers = #tpu.dot_dimension_numbers<[1], [0], [0], [1], [0, 0, 1, 1], [], []>} : vector<2x32xbf16>, vector<32x128xbf16>, vector<2x128xf32> -> vector<2x128xf32>
    %163 = arith.addf %160, %162 : vector<2x128xf32>
    %164 = arith.negf %163 : vector<2x128xf32>
    %165 = math.exp %164 : vector<2x128xf32>
    %cst_36 = arith.constant 1.000000e+00 : f32
    %166 = vector.broadcast %cst_36 : f32 to vector<2x128xf32>
    %167 = arith.addf %166, %165 : vector<2x128xf32>
    %168 = arith.divf %166, %167 : vector<2x128xf32>
    %169 = math.tanh %163 : vector<2x128xf32>
    %170 = vector.extract_strided_slice %168 {offsets = [0, 0], sizes = [2, 32], strides = [1, 1]} : vector<2x128xf32> to vector<2x32xf32>
    %171 = vector.extract_strided_slice %168 {offsets = [0, 32], sizes = [2, 32], strides = [1, 1]} : vector<2x128xf32> to vector<2x32xf32>
    %172 = vector.extract_strided_slice %169 {offsets = [0, 64], sizes = [2, 32], strides = [1, 1]} : vector<2x128xf32> to vector<2x32xf32>
    %173 = vector.extract_strided_slice %168 {offsets = [0, 96], sizes = [2, 32], strides = [1, 1]} : vector<2x128xf32> to vector<2x32xf32>
    %174 = arith.mulf %171, %135 : vector<2x32xf32>
    %175 = arith.mulf %170, %172 : vector<2x32xf32>
    %176 = arith.addf %174, %175 : vector<2x32xf32>
    %177 = math.tanh %176 : vector<2x32xf32>
    %178 = arith.mulf %173, %177 : vector<2x32xf32>
    %179 = vector.extract_strided_slice %6 {offsets = [8, 0], sizes = [2, 128], strides = [1, 1]} : vector<16x128xf32> to vector<2x128xf32>
    %180 = arith.truncf %156 : vector<2x32xf32> to vector<2x32xbf16>
    %cst_37 = arith.constant dense<0.000000e+00> : vector<2x128xf32>
    %181 = tpu.matmul %180, %7, %cst_37 {dimension_numbers = #tpu.dot_dimension_numbers<[1], [0], [0], [1], [0, 0, 1, 1], [], []>} : vector<2x32xbf16>, vector<32x128xbf16>, vector<2x128xf32> -> vector<2x128xf32>
    %182 = arith.addf %179, %181 : vector<2x128xf32>
    %183 = arith.negf %182 : vector<2x128xf32>
    %184 = math.exp %183 : vector<2x128xf32>
    %cst_38 = arith.constant 1.000000e+00 : f32
    %185 = vector.broadcast %cst_38 : f32 to vector<2x128xf32>
    %186 = arith.addf %185, %184 : vector<2x128xf32>
    %187 = arith.divf %185, %186 : vector<2x128xf32>
    %188 = math.tanh %182 : vector<2x128xf32>
    %189 = vector.extract_strided_slice %187 {offsets = [0, 0], sizes = [2, 32], strides = [1, 1]} : vector<2x128xf32> to vector<2x32xf32>
    %190 = vector.extract_strided_slice %187 {offsets = [0, 32], sizes = [2, 32], strides = [1, 1]} : vector<2x128xf32> to vector<2x32xf32>
    %191 = vector.extract_strided_slice %188 {offsets = [0, 64], sizes = [2, 32], strides = [1, 1]} : vector<2x128xf32> to vector<2x32xf32>
    %192 = vector.extract_strided_slice %187 {offsets = [0, 96], sizes = [2, 32], strides = [1, 1]} : vector<2x128xf32> to vector<2x32xf32>
    %193 = arith.mulf %190, %154 : vector<2x32xf32>
    %194 = arith.mulf %189, %191 : vector<2x32xf32>
    %195 = arith.addf %193, %194 : vector<2x32xf32>
    %196 = math.tanh %195 : vector<2x32xf32>
    %197 = arith.mulf %192, %196 : vector<2x32xf32>
    %198 = arith.truncf %197 : vector<2x32xf32> to vector<2x32xbf16>
    %cst_39 = arith.constant dense<0.000000e+00> : vector<2x128xf32>
    %199 = tpu.matmul %198, %9, %cst_39 {dimension_numbers = #tpu.dot_dimension_numbers<[1], [0], [0], [1], [0, 0, 1, 1], [], []>} : vector<2x32xbf16>, vector<32x128xbf16>, vector<2x128xf32> -> vector<2x128xf32>
    %200 = vector.broadcast %10 : vector<1x128xf32> to vector<2x128xf32>
    %201 = arith.addf %199, %200 : vector<2x128xf32>
    %202 = arith.truncf %178 : vector<2x32xf32> to vector<2x32xbf16>
    %cst_40 = arith.constant dense<0.000000e+00> : vector<2x128xf32>
    %203 = tpu.matmul %202, %8, %cst_40 {dimension_numbers = #tpu.dot_dimension_numbers<[1], [0], [0], [1], [0, 0, 1, 1], [], []>} : vector<2x32xbf16>, vector<32x128xbf16>, vector<2x128xf32> -> vector<2x128xf32>
    %204 = arith.addf %201, %203 : vector<2x128xf32>
    %205 = arith.negf %204 : vector<2x128xf32>
    %206 = math.exp %205 : vector<2x128xf32>
    %cst_41 = arith.constant 1.000000e+00 : f32
    %207 = vector.broadcast %cst_41 : f32 to vector<2x128xf32>
    %208 = arith.addf %207, %206 : vector<2x128xf32>
    %209 = arith.divf %207, %208 : vector<2x128xf32>
    %210 = math.tanh %204 : vector<2x128xf32>
    %211 = vector.extract_strided_slice %209 {offsets = [0, 0], sizes = [2, 32], strides = [1, 1]} : vector<2x128xf32> to vector<2x32xf32>
    %212 = vector.extract_strided_slice %209 {offsets = [0, 32], sizes = [2, 32], strides = [1, 1]} : vector<2x128xf32> to vector<2x32xf32>
    %213 = vector.extract_strided_slice %210 {offsets = [0, 64], sizes = [2, 32], strides = [1, 1]} : vector<2x128xf32> to vector<2x32xf32>
    %214 = vector.extract_strided_slice %209 {offsets = [0, 96], sizes = [2, 32], strides = [1, 1]} : vector<2x128xf32> to vector<2x32xf32>
    %215 = arith.mulf %212, %176 : vector<2x32xf32>
    %216 = arith.mulf %211, %213 : vector<2x32xf32>
    %217 = arith.addf %215, %216 : vector<2x32xf32>
    %218 = math.tanh %217 : vector<2x32xf32>
    %219 = arith.mulf %214, %218 : vector<2x32xf32>
    %220 = vector.extract_strided_slice %6 {offsets = [10, 0], sizes = [2, 128], strides = [1, 1]} : vector<16x128xf32> to vector<2x128xf32>
    %221 = arith.truncf %197 : vector<2x32xf32> to vector<2x32xbf16>
    %cst_42 = arith.constant dense<0.000000e+00> : vector<2x128xf32>
    %222 = tpu.matmul %221, %7, %cst_42 {dimension_numbers = #tpu.dot_dimension_numbers<[1], [0], [0], [1], [0, 0, 1, 1], [], []>} : vector<2x32xbf16>, vector<32x128xbf16>, vector<2x128xf32> -> vector<2x128xf32>
    %223 = arith.addf %220, %222 : vector<2x128xf32>
    %224 = arith.negf %223 : vector<2x128xf32>
    %225 = math.exp %224 : vector<2x128xf32>
    %cst_43 = arith.constant 1.000000e+00 : f32
    %226 = vector.broadcast %cst_43 : f32 to vector<2x128xf32>
    %227 = arith.addf %226, %225 : vector<2x128xf32>
    %228 = arith.divf %226, %227 : vector<2x128xf32>
    %229 = math.tanh %223 : vector<2x128xf32>
    %230 = vector.extract_strided_slice %228 {offsets = [0, 0], sizes = [2, 32], strides = [1, 1]} : vector<2x128xf32> to vector<2x32xf32>
    %231 = vector.extract_strided_slice %228 {offsets = [0, 32], sizes = [2, 32], strides = [1, 1]} : vector<2x128xf32> to vector<2x32xf32>
    %232 = vector.extract_strided_slice %229 {offsets = [0, 64], sizes = [2, 32], strides = [1, 1]} : vector<2x128xf32> to vector<2x32xf32>
    %233 = vector.extract_strided_slice %228 {offsets = [0, 96], sizes = [2, 32], strides = [1, 1]} : vector<2x128xf32> to vector<2x32xf32>
    %234 = arith.mulf %231, %195 : vector<2x32xf32>
    %235 = arith.mulf %230, %232 : vector<2x32xf32>
    %236 = arith.addf %234, %235 : vector<2x32xf32>
    %237 = math.tanh %236 : vector<2x32xf32>
    %238 = arith.mulf %233, %237 : vector<2x32xf32>
    %239 = arith.truncf %238 : vector<2x32xf32> to vector<2x32xbf16>
    %cst_44 = arith.constant dense<0.000000e+00> : vector<2x128xf32>
    %240 = tpu.matmul %239, %9, %cst_44 {dimension_numbers = #tpu.dot_dimension_numbers<[1], [0], [0], [1], [0, 0, 1, 1], [], []>} : vector<2x32xbf16>, vector<32x128xbf16>, vector<2x128xf32> -> vector<2x128xf32>
    %241 = vector.broadcast %10 : vector<1x128xf32> to vector<2x128xf32>
    %242 = arith.addf %240, %241 : vector<2x128xf32>
    %243 = arith.truncf %219 : vector<2x32xf32> to vector<2x32xbf16>
    %cst_45 = arith.constant dense<0.000000e+00> : vector<2x128xf32>
    %244 = tpu.matmul %243, %8, %cst_45 {dimension_numbers = #tpu.dot_dimension_numbers<[1], [0], [0], [1], [0, 0, 1, 1], [], []>} : vector<2x32xbf16>, vector<32x128xbf16>, vector<2x128xf32> -> vector<2x128xf32>
    %245 = arith.addf %242, %244 : vector<2x128xf32>
    %246 = arith.negf %245 : vector<2x128xf32>
    %247 = math.exp %246 : vector<2x128xf32>
    %cst_46 = arith.constant 1.000000e+00 : f32
    %248 = vector.broadcast %cst_46 : f32 to vector<2x128xf32>
    %249 = arith.addf %248, %247 : vector<2x128xf32>
    %250 = arith.divf %248, %249 : vector<2x128xf32>
    %251 = math.tanh %245 : vector<2x128xf32>
    %252 = vector.extract_strided_slice %250 {offsets = [0, 0], sizes = [2, 32], strides = [1, 1]} : vector<2x128xf32> to vector<2x32xf32>
    %253 = vector.extract_strided_slice %250 {offsets = [0, 32], sizes = [2, 32], strides = [1, 1]} : vector<2x128xf32> to vector<2x32xf32>
    %254 = vector.extract_strided_slice %251 {offsets = [0, 64], sizes = [2, 32], strides = [1, 1]} : vector<2x128xf32> to vector<2x32xf32>
    %255 = vector.extract_strided_slice %250 {offsets = [0, 96], sizes = [2, 32], strides = [1, 1]} : vector<2x128xf32> to vector<2x32xf32>
    %256 = arith.mulf %253, %217 : vector<2x32xf32>
    %257 = arith.mulf %252, %254 : vector<2x32xf32>
    %258 = arith.addf %256, %257 : vector<2x32xf32>
    %259 = math.tanh %258 : vector<2x32xf32>
    %260 = arith.mulf %255, %259 : vector<2x32xf32>
    %261 = vector.extract_strided_slice %6 {offsets = [12, 0], sizes = [2, 128], strides = [1, 1]} : vector<16x128xf32> to vector<2x128xf32>
    %262 = arith.truncf %238 : vector<2x32xf32> to vector<2x32xbf16>
    %cst_47 = arith.constant dense<0.000000e+00> : vector<2x128xf32>
    %263 = tpu.matmul %262, %7, %cst_47 {dimension_numbers = #tpu.dot_dimension_numbers<[1], [0], [0], [1], [0, 0, 1, 1], [], []>} : vector<2x32xbf16>, vector<32x128xbf16>, vector<2x128xf32> -> vector<2x128xf32>
    %264 = arith.addf %261, %263 : vector<2x128xf32>
    %265 = arith.negf %264 : vector<2x128xf32>
    %266 = math.exp %265 : vector<2x128xf32>
    %cst_48 = arith.constant 1.000000e+00 : f32
    %267 = vector.broadcast %cst_48 : f32 to vector<2x128xf32>
    %268 = arith.addf %267, %266 : vector<2x128xf32>
    %269 = arith.divf %267, %268 : vector<2x128xf32>
    %270 = math.tanh %264 : vector<2x128xf32>
    %271 = vector.extract_strided_slice %269 {offsets = [0, 0], sizes = [2, 32], strides = [1, 1]} : vector<2x128xf32> to vector<2x32xf32>
    %272 = vector.extract_strided_slice %269 {offsets = [0, 32], sizes = [2, 32], strides = [1, 1]} : vector<2x128xf32> to vector<2x32xf32>
    %273 = vector.extract_strided_slice %270 {offsets = [0, 64], sizes = [2, 32], strides = [1, 1]} : vector<2x128xf32> to vector<2x32xf32>
    %274 = vector.extract_strided_slice %269 {offsets = [0, 96], sizes = [2, 32], strides = [1, 1]} : vector<2x128xf32> to vector<2x32xf32>
    %275 = arith.mulf %272, %236 : vector<2x32xf32>
    %276 = arith.mulf %271, %273 : vector<2x32xf32>
    %277 = arith.addf %275, %276 : vector<2x32xf32>
    %278 = math.tanh %277 : vector<2x32xf32>
    %279 = arith.mulf %274, %278 : vector<2x32xf32>
    %280 = arith.truncf %279 : vector<2x32xf32> to vector<2x32xbf16>
    %cst_49 = arith.constant dense<0.000000e+00> : vector<2x128xf32>
    %281 = tpu.matmul %280, %9, %cst_49 {dimension_numbers = #tpu.dot_dimension_numbers<[1], [0], [0], [1], [0, 0, 1, 1], [], []>} : vector<2x32xbf16>, vector<32x128xbf16>, vector<2x128xf32> -> vector<2x128xf32>
    %282 = vector.broadcast %10 : vector<1x128xf32> to vector<2x128xf32>
    %283 = arith.addf %281, %282 : vector<2x128xf32>
    %284 = arith.truncf %260 : vector<2x32xf32> to vector<2x32xbf16>
    %cst_50 = arith.constant dense<0.000000e+00> : vector<2x128xf32>
    %285 = tpu.matmul %284, %8, %cst_50 {dimension_numbers = #tpu.dot_dimension_numbers<[1], [0], [0], [1], [0, 0, 1, 1], [], []>} : vector<2x32xbf16>, vector<32x128xbf16>, vector<2x128xf32> -> vector<2x128xf32>
    %286 = arith.addf %283, %285 : vector<2x128xf32>
    %287 = arith.negf %286 : vector<2x128xf32>
    %288 = math.exp %287 : vector<2x128xf32>
    %cst_51 = arith.constant 1.000000e+00 : f32
    %289 = vector.broadcast %cst_51 : f32 to vector<2x128xf32>
    %290 = arith.addf %289, %288 : vector<2x128xf32>
    %291 = arith.divf %289, %290 : vector<2x128xf32>
    %292 = math.tanh %286 : vector<2x128xf32>
    %293 = vector.extract_strided_slice %291 {offsets = [0, 0], sizes = [2, 32], strides = [1, 1]} : vector<2x128xf32> to vector<2x32xf32>
    %294 = vector.extract_strided_slice %291 {offsets = [0, 32], sizes = [2, 32], strides = [1, 1]} : vector<2x128xf32> to vector<2x32xf32>
    %295 = vector.extract_strided_slice %292 {offsets = [0, 64], sizes = [2, 32], strides = [1, 1]} : vector<2x128xf32> to vector<2x32xf32>
    %296 = vector.extract_strided_slice %291 {offsets = [0, 96], sizes = [2, 32], strides = [1, 1]} : vector<2x128xf32> to vector<2x32xf32>
    %297 = arith.mulf %294, %258 : vector<2x32xf32>
    %298 = arith.mulf %293, %295 : vector<2x32xf32>
    %299 = arith.addf %297, %298 : vector<2x32xf32>
    %300 = math.tanh %299 : vector<2x32xf32>
    %301 = arith.mulf %296, %300 : vector<2x32xf32>
    %302 = vector.extract_strided_slice %6 {offsets = [14, 0], sizes = [2, 128], strides = [1, 1]} : vector<16x128xf32> to vector<2x128xf32>
    %303 = arith.truncf %279 : vector<2x32xf32> to vector<2x32xbf16>
    %cst_52 = arith.constant dense<0.000000e+00> : vector<2x128xf32>
    %304 = tpu.matmul %303, %7, %cst_52 {dimension_numbers = #tpu.dot_dimension_numbers<[1], [0], [0], [1], [0, 0, 1, 1], [], []>} : vector<2x32xbf16>, vector<32x128xbf16>, vector<2x128xf32> -> vector<2x128xf32>
    %305 = arith.addf %302, %304 : vector<2x128xf32>
    %306 = arith.negf %305 : vector<2x128xf32>
    %307 = math.exp %306 : vector<2x128xf32>
    %cst_53 = arith.constant 1.000000e+00 : f32
    %308 = vector.broadcast %cst_53 : f32 to vector<2x128xf32>
    %309 = arith.addf %308, %307 : vector<2x128xf32>
    %310 = arith.divf %308, %309 : vector<2x128xf32>
    %311 = math.tanh %305 : vector<2x128xf32>
    %312 = vector.extract_strided_slice %310 {offsets = [0, 0], sizes = [2, 32], strides = [1, 1]} : vector<2x128xf32> to vector<2x32xf32>
    %313 = vector.extract_strided_slice %310 {offsets = [0, 32], sizes = [2, 32], strides = [1, 1]} : vector<2x128xf32> to vector<2x32xf32>
    %314 = vector.extract_strided_slice %311 {offsets = [0, 64], sizes = [2, 32], strides = [1, 1]} : vector<2x128xf32> to vector<2x32xf32>
    %315 = vector.extract_strided_slice %310 {offsets = [0, 96], sizes = [2, 32], strides = [1, 1]} : vector<2x128xf32> to vector<2x32xf32>
    %316 = arith.mulf %313, %277 : vector<2x32xf32>
    %317 = arith.mulf %312, %314 : vector<2x32xf32>
    %318 = arith.addf %316, %317 : vector<2x32xf32>
    %319 = math.tanh %318 : vector<2x32xf32>
    %320 = arith.mulf %315, %319 : vector<2x32xf32>
    %321 = arith.truncf %320 : vector<2x32xf32> to vector<2x32xbf16>
    %cst_54 = arith.constant dense<0.000000e+00> : vector<2x128xf32>
    %322 = tpu.matmul %321, %9, %cst_54 {dimension_numbers = #tpu.dot_dimension_numbers<[1], [0], [0], [1], [0, 0, 1, 1], [], []>} : vector<2x32xbf16>, vector<32x128xbf16>, vector<2x128xf32> -> vector<2x128xf32>
    %323 = vector.broadcast %10 : vector<1x128xf32> to vector<2x128xf32>
    %324 = arith.addf %322, %323 : vector<2x128xf32>
    %325 = arith.truncf %301 : vector<2x32xf32> to vector<2x32xbf16>
    %cst_55 = arith.constant dense<0.000000e+00> : vector<2x128xf32>
    %326 = tpu.matmul %325, %8, %cst_55 {dimension_numbers = #tpu.dot_dimension_numbers<[1], [0], [0], [1], [0, 0, 1, 1], [], []>} : vector<2x32xbf16>, vector<32x128xbf16>, vector<2x128xf32> -> vector<2x128xf32>
    %327 = arith.addf %324, %326 : vector<2x128xf32>
    %328 = arith.negf %327 : vector<2x128xf32>
    %329 = math.exp %328 : vector<2x128xf32>
    %cst_56 = arith.constant 1.000000e+00 : f32
    %330 = vector.broadcast %cst_56 : f32 to vector<2x128xf32>
    %331 = arith.addf %330, %329 : vector<2x128xf32>
    %332 = arith.divf %330, %331 : vector<2x128xf32>
    %333 = math.tanh %327 : vector<2x128xf32>
    %334 = vector.extract_strided_slice %332 {offsets = [0, 0], sizes = [2, 32], strides = [1, 1]} : vector<2x128xf32> to vector<2x32xf32>
    %335 = vector.extract_strided_slice %332 {offsets = [0, 32], sizes = [2, 32], strides = [1, 1]} : vector<2x128xf32> to vector<2x32xf32>
    %336 = vector.extract_strided_slice %333 {offsets = [0, 64], sizes = [2, 32], strides = [1, 1]} : vector<2x128xf32> to vector<2x32xf32>
    %337 = vector.extract_strided_slice %332 {offsets = [0, 96], sizes = [2, 32], strides = [1, 1]} : vector<2x128xf32> to vector<2x32xf32>
    %338 = arith.mulf %335, %299 : vector<2x32xf32>
    %339 = arith.mulf %334, %336 : vector<2x32xf32>
    %340 = arith.addf %338, %339 : vector<2x32xf32>
    %341 = math.tanh %340 : vector<2x32xf32>
    %342 = arith.mulf %337, %341 : vector<2x32xf32>
    %c0_57 = arith.constant 0 : index
    %c0_58 = arith.constant 0 : index
    %343 = vector.load %arg7[%c0_57, %c0_58] : memref<1x32xf32, #tpu.memory_space<vmem>>, vector<1x32xf32>
    %344 = vector.broadcast %343 : vector<1x32xf32> to vector<2x32xf32>
    %345 = arith.mulf %342, %344 : vector<2x32xf32>
    %cst_59 = arith.constant dense<0.000000e+00> : vector<2xf32>
    %346 = vector.multi_reduction <add>, %345, %cst_59 [1] : vector<2x32xf32> to vector<2xf32>
    %347 = vector.shape_cast %346 : vector<2xf32> to vector<2x1xf32>
    %c0_60 = arith.constant 0 : index
    %c0_61 = arith.constant 0 : index
    %348 = vector.load %arg8[%c0_60, %c0_61] : memref<1x1xf32, #tpu.memory_space<vmem>>, vector<1x1xf32>
    %349 = vector.broadcast %348 : vector<1x1xf32> to vector<2x1xf32>
    %350 = arith.addf %347, %349 : vector<2x1xf32>
    %c0_62 = arith.constant 0 : index
    %c0_63 = arith.constant 0 : index
    %351 = vector.load %arg9[%c0_62, %c0_63] : memref<2x1xf32, #tpu.memory_space<vmem>>, vector<2x1xf32>
    tpu.vector_store %arg9[%c0_62, %c0_63], %350 {strides = array<i32>} : memref<2x1xf32, #tpu.memory_space<vmem>>, vector<2x1xf32>,
    return
  }
}

</mosaic_0001>

<llo_original>
// kernel: tpu_custom_call.1
$region0: #{tpu_custom_call.1}
  #allocation0 [shape = 'u32[]', space=smem, size = 0x4, offset = 0x4, fixed_abs, tag = 'smem constant byte address 0x4 - core index']
  #allocation1 [shape = 'u32[72,128]{1,0:T(1,128)}', space=vmem, size = 0x9000, scoped, tag = 'internal scratch']
  #allocation2 [shape = 'f32[1,1]{1,0:T(1,128)S(1)}', space=vmem, size = 0x200, scoped, tag = 'scoped memory for tpu_custom_call.1']
  %s0 = inlined_call_operand.vmem [shape: f32[16,4], index: 0, kind: input, shape index: {}]
  %s1 = inlined_call_operand.vmem [shape: bf16[4,128], index: 1, kind: input, shape index: {}]
  %s2 = inlined_call_operand.vmem [shape: bf16[32,128], index: 2, kind: input, shape index: {}]
  %s3 = inlined_call_operand.vmem [shape: f32[1,128], index: 3, kind: input, shape index: {}]
  %s4 = inlined_call_operand.hbm [shape: bf16[32,128], index: 4, kind: input, shape index: {}]
  %s5 = inlined_call_operand.hbm [shape: bf16[32,128], index: 5, kind: input, shape index: {}]
  %s6 = inlined_call_operand.vmem [shape: f32[1,128], index: 6, kind: input, shape index: {}]
  %s7 = inlined_call_operand.vmem [shape: f32[1,32], index: 7, kind: input, shape index: {}]
  %s8 = inlined_call_operand.<no memory space> [shape: f32[1,1], index: 8, kind: input, shape index: {}]
  %s9 = inlined_call_operand.vmem [shape: f32[2,1], index: 9, kind: output, shape index: {}]
  %s10 = sld [smem:[#allocation0]]
  $region54: #{tpu_custom_call.1} parent=0
    _
  %s12 = ssub.s32 1, %s10
  %s13 = scalar_select 0, %s12, %s10
  %v14 = vstv %s8
  %15 = vst [vmem:[#allocation2] sm:$0x1] %v14
  $region1: #{tpu_custom_call.1} parent=0
    #allocation3 [shape = 'u8[8192]{0}', space=vmem, size = 0x2000, scoped, tag = 'input window, operand 4, single buffered']
    #allocation4 [shape = 's32[1]{0}', space=sflag, size = 0x4, scoped, tag = 'scoped memory for tpu_custom_call.1']
    #allocation5 [shape = 'u8[8192]{0}', space=vmem, size = 0x2000, scoped, tag = 'input window, operand 5, single buffered']
    #allocation6 [shape = 's32[1]{0}', space=sflag, size = 0x4, scoped, tag = 'scoped memory for tpu_custom_call.1']
    %16 = vsyncpa [#allocation4], 0
    %17 = vsyncpa [#allocation6], 0
    // Predicated region
    $region2: #{tpu_custom_call.1} parent=1 // pred_check
      _
    $region3: #{tpu_custom_call.1} parent=1 // pred_check_branch
      %19 = sbr.rel (0) target = $region5
    $region4: #{tpu_custom_call.1} parent=1 // pred_region
      _
    $region5: #{tpu_custom_call.1} parent=1 // pred_fallthru
      _
    // Predicated region
    $region6: #{tpu_custom_call.1} parent=1 // pred_check
      _
    $region7: #{tpu_custom_call.1} parent=1 // pred_check_branch
      %21 = sbr.rel (0) target = $region9
    $region8: #{tpu_custom_call.1} parent=1 // pred_region
      _
    $region9: #{tpu_custom_call.1} parent=1 // pred_fallthru
      _
    // Predicated region
    $region10: #{tpu_custom_call.1} parent=1 // pred_check
      _
    $region11: #{tpu_custom_call.1} parent=1 // pred_check_branch
      %23 = sbr.rel (0) target = $region13
    $region12: #{tpu_custom_call.1} parent=1 // pred_region
      _
    $region13: #{tpu_custom_call.1} parent=1 // pred_fallthru
      _
    // Predicated region
    $region14: #{tpu_custom_call.1} parent=1 // pred_check
      _
    $region15: #{tpu_custom_call.1} parent=1 // pred_check_branch
      %25 = sbr.rel (0) target = $region17
    $region16: #{tpu_custom_call.1} parent=1 // pred_region
      _
    $region17: #{tpu_custom_call.1} parent=1 // pred_fallthru
      _
    // Predicated region
    $region18: #{tpu_custom_call.1} parent=1 // pred_check
      _
    $region19: #{tpu_custom_call.1} parent=1 // pred_check_branch
      %27 = sbr.rel (0) target = $region21
    $region20: #{tpu_custom_call.1} parent=1 // pred_region
      %29 = vsyncadd [#allocation4], 0
      %s30 = sshll.u32 %s4, 4
      %s31 = int_to_ptr.hbm [resolvable:$true] %s30
      %s32 = sshll.u32 [#allocation3], 4
      %s33 = int_to_ptr.vmem [resolvable:$true] %s32
      %38 = dma.hbm_to_vmem [thread:$0]  %s31, 256, %s33, [#allocation4], 64, 64, 4
    $region21: #{tpu_custom_call.1} parent=1 // pred_fallthru
      _
    // Predicated region
    $region22: #{tpu_custom_call.1} parent=1 // pred_check
      _
    $region23: #{tpu_custom_call.1} parent=1 // pred_check_branch
      %40 = sbr.rel (0) target = $region25
    $region24: #{tpu_custom_call.1} parent=1 // pred_region
      %42 = vsyncadd [#allocation6], 0
      %s43 = sshll.u32 %s5, 4
      %s44 = int_to_ptr.hbm [resolvable:$true] %s43
      %s45 = sshll.u32 [#allocation5], 4
      %s46 = int_to_ptr.vmem [resolvable:$true] %s45
      %51 = dma.hbm_to_vmem [thread:$0]  %s44, 256, %s46, [#allocation6], 64, 64, 4
    $region25: #{tpu_custom_call.1} parent=1 // pred_fallthru
      _
    // Predicated region
    $region26: #{tpu_custom_call.1} parent=1 // pred_check
      _
    $region27: #{tpu_custom_call.1} parent=1 // pred_check_branch
      %53 = sbr.rel (0) target = $region29
    $region28: #{tpu_custom_call.1} parent=1 // pred_region
      _
    $region29: #{tpu_custom_call.1} parent=1 // pred_fallthru
      _
    // Predicated region
    $region30: #{tpu_custom_call.1} parent=1 // pred_check
      _
    $region31: #{tpu_custom_call.1} parent=1 // pred_check_branch
      %55 = sbr.rel (0) target = $region33
    $region32: #{tpu_custom_call.1} parent=1 // pred_region
      _
    $region33: #{tpu_custom_call.1} parent=1 // pred_fallthru
      _
    // Predicated region
    $region34: #{tpu_custom_call.1} parent=1 // pred_check
      _
    $region35: #{tpu_custom_call.1} parent=1 // pred_check_branch
      %57 = sbr.rel (0) target = $region37
    $region36: #{tpu_custom_call.1} parent=1 // pred_region
      _
    $region37: #{tpu_custom_call.1} parent=1 // pred_fallthru
      _
    // Predicated region
    $region38: #{tpu_custom_call.1} parent=1 // pred_check
      _
    $region39: #{tpu_custom_call.1} parent=1 // pred_check_branch
      %59 = sbr.rel (0) target = $region41
    $region40: #{tpu_custom_call.1} parent=1 // pred_region
      %61 = dma.done [#allocation4], 256
    $region41: #{tpu_custom_call.1} parent=1 // pred_fallthru
      _
    // Predicated region
    $region42: #{tpu_custom_call.1} parent=1 // pred_check
      _
    $region43: #{tpu_custom_call.1} parent=1 // pred_check_branch
      %63 = sbr.rel (0) target = $region45
    $region44: #{tpu_custom_call.1} parent=1 // pred_region
      %65 = dma.done [#allocation6], 256
    $region45: #{tpu_custom_call.1} parent=1 // pred_fallthru
      _
    %v67 = vld [vmem:[%s0] sm:$0xff]
    %v68 = vld [vmem:[%s0 + $0x8] sm:$0xff]
    %v69 = vpack.c.bf16 %v68, %v67
    %v70 = vld [vmem:[%s1] sm:$0x3]
    %v71 = vld [vmem:[%s3] sm:$0x1]
    %v73 = vperm.slane %v71, 0
    %vm75 = vcmask 31744
    %v77 = vsel %vm75, %v69, 0
    %vm79 = vcmask 1041408
    %v81 = vsel %vm79, %v70, 0
    %83 = vmatpush.bf16.msra.mxu0 0
    %84 = vmatpush.bf16.msra.mxu0 0
    %85 = vmatpush.bf16.msra.mxu0 0
    %86 = vmatpush.bf16.msra.mxu0 0
    %87 = vmatpush.bf16.msra.mxu0 0
    %88 = vmatpush.bf16.msra.mxu0 0
    %89 = vmatpush.bf16.msra.mxu0 0
    %90 = vmatpush.bf16.msra.mxu0 %v81
    %91 = vmatmul.bf16.gmra.mxu0 %v77
    %v92 = vpop.f32.mrf.mxu0
    %v93 = vadd.f32 %v73, %v92
    %v94 = vpop.f32.mrf.mxu0
    %v95 = vadd.f32 %v73, %v94
    %96 = vdwg.mxu0
    %v97 = vld [vmem:[%s2] sm:$0xf]
    %v98 = vld [vmem:[%s2 + $0x4] sm:$0xf]
    %v99 = vld [vmem:[%s2 + $0x8] sm:$0xf]
    %v100 = vld [vmem:[%s2 + $0xc] sm:$0xf]
    %v101 = vld [vmem:[#allocation5] sm:$0xf]
    %v102 = vld [vmem:[#allocation5 + $0x4] sm:$0xf]
    %v103 = vld [vmem:[#allocation5 + $0x8] sm:$0xf]
    %v104 = vld [vmem:[#allocation5 + $0xc] sm:$0xf]
    %v105 = vld [vmem:[#allocation3] sm:$0xf]
    %v106 = vld [vmem:[#allocation3 + $0x4] sm:$0xf]
    %v107 = vld [vmem:[#allocation3 + $0x8] sm:$0xf]
    %v108 = vld [vmem:[#allocation3 + $0xc] sm:$0xf]
    %v109 = vld [vmem:[%s6] sm:$0x1]
    %v114 = vunpack.c.l.b16 %v97
    %v115 = vunpack.c.l.b16 %v98
    %v116 = vunpack.c.l.b16 %v99
    %v117 = vunpack.c.l.b16 %v100
    %v118 = vpack.c.b16 %v115, %v114
    %v119 = vpack.c.b16 %v117, %v116
    %vm122 = vcmask 261120
    %v124 = vsel %vm122, 0, 0
    %126 = vmatpush.bf16.msra.mxu0 0
    %127 = vmatpush.bf16.msra.mxu0 0
    %128 = vmatpush.bf16.msra.mxu0 0
    %129 = vmatpush.bf16.msra.mxu0 0
    %130 = vmatpush.bf16.msra.mxu0 0
    %131 = vmatpush.bf16.msra.mxu0 0
    %132 = vmatpush.bf16.msra.mxu0 %v119
    %133 = vmatpush.bf16.msra.mxu0 %v118
    %134 = vmatmul.bf16.gmra.mxu0 %v124
    %v135 = vpop.f32.mrf.mxu0
    %v136 = vadd.f32 0.0, %v135
    %v137 = vpop.f32.mrf.mxu0
    %138 = vdwg.mxu0
    %v139 = vadd.f32 %v93, %v136
    %v140 = vxor.u32 %v139, 2147483648
    %v141 = vmul.f32 %v140, 1.442695
    %v142 = vpow.pop %v141
    %v143 = vadd.f32 %v142, 1.0
    %v144 = vrcp.pop %v143
    %v145 = vmul.f32 %v143, %v144
    %v146 = vsub.f32 1.0, %v145
    %v147 = vmul.f32 %v144, %v146
    %v148 = vadd.f32 %v144, %v147
    %vm149 = vweird.f32 %v143
    %vm150 = vweird.f32 %v144
    %vm151 = vmor %vm149, %vm150
    %v152 = vsel %vm151, %v144, %v148
    %v153 = vand.u32 2147483647, %v143
    %vm154 = vcmp.eq.f32.partialorder %v153, 8.507059e+37
    %v155 = vand.u32 %v143, 2147483648
    %v156 = vor.u32 1.1754944e-38, %v155
    %v157 = vsel %vm154, %v156, %v152
    %v158 = vmul.f32 1.0, %v157
    %v159 = vtanh.pop %v139
    %v160 = vmul.f32 %v158, 0.0
    %162 = vrot.lane.b32.xlu0 %v159, 64
    %v163 = vpop.permute.xlu0 %162
    %v165 = vmul.f32 %v158, %v163
    %167 = vrot.lane.b32.xlu0 %v165, 32
    %v168 = vpop.permute.xlu0 %167
    %v170 = vadd.f32 %v160, %v168
    %v171 = vtanh.pop %v170
    %173 = vrot.lane.b32.xlu0 %v171, 64
    %v174 = vpop.permute.xlu0 %173
    %v176 = vmul.f32 %v158, %v174
    %v177 = vpack.c.bf16 %v176, %v176
    %v179 = vperm.slane %v109, 0
    %182 = vrot.lane.b32.xlu0 %v177, 32
    %v183 = vpop.permute.xlu0 %182
    %v188 = vunpack.c.l.b16 %v105
    %v189 = vunpack.c.l.b16 %v106
    %v190 = vunpack.c.l.b16 %v107
    %v191 = vunpack.c.l.b16 %v108
    %v192 = vpack.c.b16 %v189, %v188
    %v193 = vpack.c.b16 %v191, %v190
    %v197 = vsel %vm122, %v183, 0
    %199 = vmatpush.bf16.msra.mxu0 0
    %200 = vmatpush.bf16.msra.mxu0 0
    %201 = vmatpush.bf16.msra.mxu0 0
    %202 = vmatpush.bf16.msra.mxu0 0
    %203 = vmatpush.bf16.msra.mxu0 0
    %204 = vmatpush.bf16.msra.mxu0 0
    %205 = vmatpush.bf16.msra.mxu0 %v193
    %206 = vmatpush.bf16.msra.mxu0 %v192
    %207 = vmatmul.bf16.gmra.mxu0 %v197
    %v208 = vpop.f32.mrf.mxu0
    %v209 = vadd.f32 %v179, %v208
    %v210 = vpop.f32.mrf.mxu0
    %211 = vdwg.mxu0
    %v216 = vunpack.c.l.b16 %v101
    %v217 = vunpack.c.l.b16 %v102
    %v218 = vunpack.c.l.b16 %v103
    %v219 = vunpack.c.l.b16 %v104
    %v220 = vpack.c.b16 %v217, %v216
    %v221 = vpack.c.b16 %v219, %v218
    %224 = vmatpush.bf16.msra.mxu0 0
    %225 = vmatpush.bf16.msra.mxu0 0
    %226 = vmatpush.bf16.msra.mxu0 0
    %227 = vmatpush.bf16.msra.mxu0 0
    %228 = vmatpush.bf16.msra.mxu0 0
    %229 = vmatpush.bf16.msra.mxu0 0
    %230 = vmatpush.bf16.msra.mxu0 %v221
    %231 = vmatpush.bf16.msra.mxu0 %v220
    %232 = vmatmul.bf16.gmra.mxu0 %v124
    %v233 = vpop.f32.mrf.mxu0
    %v234 = vadd.f32 0.0, %v233
    %v235 = vpop.f32.mrf.mxu0
    %236 = vdwg.mxu0
    %v237 = vadd.f32 %v209, %v234
    %v238 = vxor.u32 %v237, 2147483648
    %v239 = vmul.f32 %v238, 1.442695
    %v240 = vpow.pop %v239
    %v241 = vadd.f32 %v240, 1.0
    %v242 = vrcp.pop %v241
    %v243 = vmul.f32 %v241, %v242
    %v244 = vsub.f32 1.0, %v243
    %v245 = vmul.f32 %v242, %v244
    %v246 = vadd.f32 %v242, %v245
    %vm247 = vweird.f32 %v241
    %vm248 = vweird.f32 %v242
    %vm249 = vmor %vm247, %vm248
    %v250 = vsel %vm249, %v242, %v246
    %v251 = vand.u32 2147483647, %v241
    %vm252 = vcmp.eq.f32.partialorder %v251, 8.507059e+37
    %v253 = vand.u32 %v241, 2147483648
    %v254 = vor.u32 1.1754944e-38, %v253
    %v255 = vsel %vm252, %v254, %v250
    %v256 = vmul.f32 1.0, %v255
    %v257 = vtanh.pop %v237
    %v258 = vmul.f32 %v256, 0.0
    %260 = vrot.lane.b32.xlu0 %v257, 64
    %v261 = vpop.permute.xlu0 %260
    %v263 = vmul.f32 %v256, %v261
    %265 = vrot.lane.b32.xlu0 %v263, 32
    %v266 = vpop.permute.xlu0 %265
    %v268 = vadd.f32 %v258, %v266
    %v269 = vtanh.pop %v268
    %271 = vrot.lane.b32.xlu0 %v269, 64
    %v272 = vpop.permute.xlu0 %271
    %v274 = vmul.f32 %v256, %v272
    %275 = vmatpush.bf16.msra.mxu0 0
    %276 = vmatpush.bf16.msra.mxu0 0
    %277 = vmatpush.bf16.msra.mxu0 0
    %278 = vmatpush.bf16.msra.mxu0 0
    %279 = vmatpush.bf16.msra.mxu0 0
    %280 = vmatpush.bf16.msra.mxu0 0
    %281 = vmatpush.bf16.msra.mxu0 %v119
    %282 = vmatpush.bf16.msra.mxu0 %v118
    %283 = vmatmul.bf16.gmra.mxu0 %v197
    %v284 = vpop.f32.mrf.mxu0
    %v285 = vadd.f32 0.0, %v284
    %v286 = vpop.f32.mrf.mxu0
    %287 = vdwg.mxu0
    %v289 = vrot.slane %v285, 6
    %v291 = vadd.f32 %v93, %v289
    %v292 = vxor.u32 %v291, 2147483648
    %v293 = vmul.f32 %v292, 1.442695
    %v294 = vpow.pop %v293
    %v295 = vadd.f32 %v294, 1.0
    %v296 = vrcp.pop %v295
    %v297 = vmul.f32 %v295, %v296
    %v298 = vsub.f32 1.0, %v297
    %v299 = vmul.f32 %v296, %v298
    %v300 = vadd.f32 %v296, %v299
    %vm301 = vweird.f32 %v295
    %vm302 = vweird.f32 %v296
    %vm303 = vmor %vm301, %vm302
    %v304 = vsel %vm303, %v296, %v300
    %v305 = vand.u32 2147483647, %v295
    %vm306 = vcmp.eq.f32.partialorder %v305, 8.507059e+37
    %v307 = vand.u32 %v295, 2147483648
    %v308 = vor.u32 1.1754944e-38, %v307
    %v309 = vsel %vm306, %v308, %v304
    %v310 = vmul.f32 1.0, %v309
    %v311 = vtanh.pop %v291
    %v313 = vrot.slane %v170, 6
    %v315 = vmul.f32 %v310, %v313
    %317 = vrot.lane.b32.xlu0 %v311, 64
    %v318 = vpop.permute.xlu0 %317
    %v320 = vmul.f32 %v310, %v318
    %322 = vrot.lane.b32.xlu0 %v320, 32
    %v323 = vpop.permute.xlu0 %322
    %v325 = vadd.f32 %v315, %v323
    %v326 = vtanh.pop %v325
    %328 = vrot.lane.b32.xlu0 %v326, 64
    %v329 = vpop.permute.xlu0 %328
    %v331 = vmul.f32 %v310, %v329
    %v332 = vpack.c.bf16 %v331, %v331
    %v334 = vrot.slane %v332, 1
    %335 = vrot.lane.b32.xlu0 %v334, 32
    %v336 = vpop.permute.xlu0 %335
    %v338 = vsel %vm122, %v336, 0
    %340 = vmatpush.bf16.msra.mxu0 0
    %341 = vmatpush.bf16.msra.mxu0 0
    %342 = vmatpush.bf16.msra.mxu0 0
    %343 = vmatpush.bf16.msra.mxu0 0
    %344 = vmatpush.bf16.msra.mxu0 0
    %345 = vmatpush.bf16.msra.mxu0 0
    %346 = vmatpush.bf16.msra.mxu0 %v193
    %347 = vmatpush.bf16.msra.mxu0 %v192
    %348 = vmatmul.bf16.gmra.mxu0 %v338
    %v349 = vpop.f32.mrf.mxu0
    %v350 = vadd.f32 %v179, %v349
    %v351 = vpop.f32.mrf.mxu0
    %352 = vdwg.mxu0
    %v353 = vpack.c.bf16 %v274, %v274
    %355 = vrot.lane.b32.xlu0 %v353, 32
    %v356 = vpop.permute.xlu0 %355
    %v358 = vsel %vm122, %v356, 0
    %360 = vmatpush.bf16.msra.mxu0 0
    %361 = vmatpush.bf16.msra.mxu0 0
    %362 = vmatpush.bf16.msra.mxu0 0
    %363 = vmatpush.bf16.msra.mxu0 0
    %364 = vmatpush.bf16.msra.mxu0 0
    %365 = vmatpush.bf16.msra.mxu0 0
    %366 = vmatpush.bf16.msra.mxu0 %v221
    %367 = vmatpush.bf16.msra.mxu0 %v220
    %368 = vmatmul.bf16.gmra.mxu0 %v358
    %v369 = vpop.f32.mrf.mxu0
    %v370 = vadd.f32 0.0, %v369
    %v371 = vpop.f32.mrf.mxu0
    %372 = vdwg.mxu0
    %v373 = vadd.f32 %v350, %v370
    %v374 = vxor.u32 %v373, 2147483648
    %v375 = vmul.f32 %v374, 1.442695
    %v376 = vpow.pop %v375
    %v377 = vadd.f32 %v376, 1.0
    %v378 = vrcp.pop %v377
    %v379 = vmul.f32 %v377, %v378
    %v380 = vsub.f32 1.0, %v379
    %v381 = vmul.f32 %v378, %v380
    %v382 = vadd.f32 %v378, %v381
    %vm383 = vweird.f32 %v377
    %vm384 = vweird.f32 %v378
    %vm385 = vmor %vm383, %vm384
    %v386 = vsel %vm385, %v378, %v382
    %v387 = vand.u32 2147483647, %v377
    %vm388 = vcmp.eq.f32.partialorder %v387, 8.507059e+37
    %v389 = vand.u32 %v377, 2147483648
    %v390 = vor.u32 1.1754944e-38, %v389
    %v391 = vsel %vm388, %v390, %v386
    %v392 = vmul.f32 1.0, %v391
    %v393 = vtanh.pop %v373
    %v394 = vmul.f32 %v392, %v268
    %396 = vrot.lane.b32.xlu0 %v393, 64
    %v397 = vpop.permute.xlu0 %396
    %v399 = vmul.f32 %v392, %v397
    %401 = vrot.lane.b32.xlu0 %v399, 32
    %v402 = vpop.permute.xlu0 %401
    %v404 = vadd.f32 %v394, %v402
    %v405 = vtanh.pop %v404
    %407 = vrot.lane.b32.xlu0 %v405, 64
    %v408 = vpop.permute.xlu0 %407
    %v410 = vmul.f32 %v392, %v408
    %411 = vmatpush.bf16.msra.mxu0 0
    %412 = vmatpush.bf16.msra.mxu0 0
    %413 = vmatpush.bf16.msra.mxu0 0
    %414 = vmatpush.bf16.msra.mxu0 0
    %415 = vmatpush.bf16.msra.mxu0 0
    %416 = vmatpush.bf16.msra.mxu0 0
    %417 = vmatpush.bf16.msra.mxu0 %v119
    %418 = vmatpush.bf16.msra.mxu0 %v118
    %419 = vmatmul.bf16.gmra.mxu0 %v338
    %v420 = vpop.f32.mrf.mxu0
    %v421 = vadd.f32 0.0, %v420
    %v422 = vpop.f32.mrf.mxu0
    %423 = vdwg.mxu0
    %v425 = vrot.slane %v421, 4
    %v427 = vadd.f32 %v93, %v425
    %v428 = vxor.u32 %v427, 2147483648
    %v429 = vmul.f32 %v428, 1.442695
    %v430 = vpow.pop %v429
    %v431 = vadd.f32 %v430, 1.0
    %v432 = vrcp.pop %v431
    %v433 = vmul.f32 %v431, %v432
    %v434 = vsub.f32 1.0, %v433
    %v435 = vmul.f32 %v432, %v434
    %v436 = vadd.f32 %v432, %v435
    %vm437 = vweird.f32 %v431
    %vm438 = vweird.f32 %v432
    %vm439 = vmor %vm437, %vm438
    %v440 = vsel %vm439, %v432, %v436
    %v441 = vand.u32 2147483647, %v431
    %vm442 = vcmp.eq.f32.partialorder %v441, 8.507059e+37
    %v443 = vand.u32 %v431, 2147483648
    %v444 = vor.u32 1.1754944e-38, %v443
    %v445 = vsel %vm442, %v444, %v440
    %v446 = vmul.f32 1.0, %v445
    %v447 = vtanh.pop %v427
    %v449 = vrot.slane %v325, 6
    %v451 = vmul.f32 %v446, %v449
    %453 = vrot.lane.b32.xlu0 %v447, 64
    %v454 = vpop.permute.xlu0 %453
    %v456 = vmul.f32 %v446, %v454
    %458 = vrot.lane.b32.xlu0 %v456, 32
    %v459 = vpop.permute.xlu0 %458
    %v461 = vadd.f32 %v451, %v459
    %v462 = vtanh.pop %v461
    %464 = vrot.lane.b32.xlu0 %v462, 64
    %v465 = vpop.permute.xlu0 %464
    %v467 = vmul.f32 %v446, %v465
    %v468 = vpack.c.bf16 %v467, %v467
    %v470 = vrot.slane %v468, 2
    %471 = vrot.lane.b32.xlu0 %v470, 32
    %v472 = vpop.permute.xlu0 %471
    %v474 = vsel %vm122, %v472, 0
    %476 = vmatpush.bf16.msra.mxu0 0
    %477 = vmatpush.bf16.msra.mxu0 0
    %478 = vmatpush.bf16.msra.mxu0 0
    %479 = vmatpush.bf16.msra.mxu0 0
    %480 = vmatpush.bf16.msra.mxu0 0
    %481 = vmatpush.bf16.msra.mxu0 0
    %482 = vmatpush.bf16.msra.mxu0 %v193
    %483 = vmatpush.bf16.msra.mxu0 %v192
    %484 = vmatmul.bf16.gmra.mxu0 %v474
    %v485 = vpop.f32.mrf.mxu0
    %v486 = vadd.f32 %v179, %v485
    %v487 = vpop.f32.mrf.mxu0
    %488 = vdwg.mxu0
    %v489 = vpack.c.bf16 %v410, %v410
    %491 = vrot.lane.b32.xlu0 %v489, 32
    %v492 = vpop.permute.xlu0 %491
    %v494 = vsel %vm122, %v492, 0
    %496 = vmatpush.bf16.msra.mxu0 0
    %497 = vmatpush.bf16.msra.mxu0 0
    %498 = vmatpush.bf16.msra.mxu0 0
    %499 = vmatpush.bf16.msra.mxu0 0
    %500 = vmatpush.bf16.msra.mxu0 0
    %501 = vmatpush.bf16.msra.mxu0 0
    %502 = vmatpush.bf16.msra.mxu0 %v221
    %503 = vmatpush.bf16.msra.mxu0 %v220
    %504 = vmatmul.bf16.gmra.mxu0 %v494
    %v505 = vpop.f32.mrf.mxu0
    %v506 = vadd.f32 0.0, %v505
    %v507 = vpop.f32.mrf.mxu0
    %508 = vdwg.mxu0
    %v509 = vadd.f32 %v486, %v506
    %v510 = vxor.u32 %v509, 2147483648
    %v511 = vmul.f32 %v510, 1.442695
    %v512 = vpow.pop %v511
    %v513 = vadd.f32 %v512, 1.0
    %v514 = vrcp.pop %v513
    %v515 = vmul.f32 %v513, %v514
    %v516 = vsub.f32 1.0, %v515
    %v517 = vmul.f32 %v514, %v516
    %v518 = vadd.f32 %v514, %v517
    %vm519 = vweird.f32 %v513
    %vm520 = vweird.f32 %v514
    %vm521 = vmor %vm519, %vm520
    %v522 = vsel %vm521, %v514, %v518
    %v523 = vand.u32 2147483647, %v513
    %vm524 = vcmp.eq.f32.partialorder %v523, 8.507059e+37
    %v525 = vand.u32 %v513, 2147483648
    %v526 = vor.u32 1.1754944e-38, %v525
    %v527 = vsel %vm524, %v526, %v522
    %v528 = vmul.f32 1.0, %v527
    %v529 = vtanh.pop %v509
    %v530 = vmul.f32 %v528, %v404
    %532 = vrot.lane.b32.xlu0 %v529, 64
    %v533 = vpop.permute.xlu0 %532
    %v535 = vmul.f32 %v528, %v533
    %537 = vrot.lane.b32.xlu0 %v535, 32
    %v538 = vpop.permute.xlu0 %537
    %v540 = vadd.f32 %v530, %v538
    %v541 = vtanh.pop %v540
    %543 = vrot.lane.b32.xlu0 %v541, 64
    %v544 = vpop.permute.xlu0 %543
    %v546 = vmul.f32 %v528, %v544
    %547 = vmatpush.bf16.msra.mxu0 0
    %548 = vmatpush.bf16.msra.mxu0 0
    %549 = vmatpush.bf16.msra.mxu0 0
    %550 = vmatpush.bf16.msra.mxu0 0
    %551 = vmatpush.bf16.msra.mxu0 0
    %552 = vmatpush.bf16.msra.mxu0 0
    %553 = vmatpush.bf16.msra.mxu0 %v119
    %554 = vmatpush.bf16.msra.mxu0 %v118
    %555 = vmatmul.bf16.gmra.mxu0 %v474
    %v556 = vpop.f32.mrf.mxu0
    %v557 = vadd.f32 0.0, %v556
    %v558 = vpop.f32.mrf.mxu0
    %559 = vdwg.mxu0
    %v561 = vrot.slane %v557, 2
    %v563 = vadd.f32 %v93, %v561
    %v564 = vxor.u32 %v563, 2147483648
    %v565 = vmul.f32 %v564, 1.442695
    %v566 = vpow.pop %v565
    %v567 = vadd.f32 %v566, 1.0
    %v568 = vrcp.pop %v567
    %v569 = vmul.f32 %v567, %v568
    %v570 = vsub.f32 1.0, %v569
    %v571 = vmul.f32 %v568, %v570
    %v572 = vadd.f32 %v568, %v571
    %vm573 = vweird.f32 %v567
    %vm574 = vweird.f32 %v568
    %vm575 = vmor %vm573, %vm574
    %v576 = vsel %vm575, %v568, %v572
    %v577 = vand.u32 2147483647, %v567
    %vm578 = vcmp.eq.f32.partialorder %v577, 8.507059e+37
    %v579 = vand.u32 %v567, 2147483648
    %v580 = vor.u32 1.1754944e-38, %v579
    %v581 = vsel %vm578, %v580, %v576
    %v582 = vmul.f32 1.0, %v581
    %v583 = vtanh.pop %v563
    %v585 = vrot.slane %v461, 6
    %v587 = vmul.f32 %v582, %v585
    %589 = vrot.lane.b32.xlu0 %v583, 64
    %v590 = vpop.permute.xlu0 %589
    %v592 = vmul.f32 %v582, %v590
    %594 = vrot.lane.b32.xlu0 %v592, 32
    %v595 = vpop.permute.xlu0 %594
    %v597 = vadd.f32 %v587, %v595
    %v598 = vtanh.pop %v597
    %600 = vrot.lane.b32.xlu0 %v598, 64
    %v601 = vpop.permute.xlu0 %600
    %v603 = vmul.f32 %v582, %v601
    %v604 = vpack.c.bf16 %v603, %v603
    %v606 = vrot.slane %v604, 3
    %607 = vrot.lane.b32.xlu0 %v606, 32
    %v608 = vpop.permute.xlu0 %607
    %v610 = vsel %vm122, %v608, 0
    %612 = vmatpush.bf16.msra.mxu0 0
    %613 = vmatpush.bf16.msra.mxu0 0
    %614 = vmatpush.bf16.msra.mxu0 0
    %615 = vmatpush.bf16.msra.mxu0 0
    %616 = vmatpush.bf16.msra.mxu0 0
    %617 = vmatpush.bf16.msra.mxu0 0
    %618 = vmatpush.bf16.msra.mxu0 %v193
    %619 = vmatpush.bf16.msra.mxu0 %v192
    %620 = vmatmul.bf16.gmra.mxu0 %v610
    %v621 = vpop.f32.mrf.mxu0
    %v622 = vadd.f32 %v179, %v621
    %v623 = vpop.f32.mrf.mxu0
    %624 = vdwg.mxu0
    %v625 = vpack.c.bf16 %v546, %v546
    %627 = vrot.lane.b32.xlu0 %v625, 32
    %v628 = vpop.permute.xlu0 %627
    %v630 = vsel %vm122, %v628, 0
    %632 = vmatpush.bf16.msra.mxu0 0
    %633 = vmatpush.bf16.msra.mxu0 0
    %634 = vmatpush.bf16.msra.mxu0 0
    %635 = vmatpush.bf16.msra.mxu0 0
    %636 = vmatpush.bf16.msra.mxu0 0
    %637 = vmatpush.bf16.msra.mxu0 0
    %638 = vmatpush.bf16.msra.mxu0 %v221
    %639 = vmatpush.bf16.msra.mxu0 %v220
    %640 = vmatmul.bf16.gmra.mxu0 %v630
    %v641 = vpop.f32.mrf.mxu0
    %v642 = vadd.f32 0.0, %v641
    %v643 = vpop.f32.mrf.mxu0
    %644 = vdwg.mxu0
    %v645 = vadd.f32 %v622, %v642
    %v646 = vxor.u32 %v645, 2147483648
    %v647 = vmul.f32 %v646, 1.442695
    %v648 = vpow.pop %v647
    %v649 = vadd.f32 %v648, 1.0
    %v650 = vrcp.pop %v649
    %v651 = vmul.f32 %v649, %v650
    %v652 = vsub.f32 1.0, %v651
    %v653 = vmul.f32 %v650, %v652
    %v654 = vadd.f32 %v650, %v653
    %vm655 = vweird.f32 %v649
    %vm656 = vweird.f32 %v650
    %vm657 = vmor %vm655, %vm656
    %v658 = vsel %vm657, %v650, %v654
    %v659 = vand.u32 2147483647, %v649
    %vm660 = vcmp.eq.f32.partialorder %v659, 8.507059e+37
    %v661 = vand.u32 %v649, 2147483648
    %v662 = vor.u32 1.1754944e-38, %v661
    %v663 = vsel %vm660, %v662, %v658
    %v664 = vmul.f32 1.0, %v663
    %v665 = vtanh.pop %v645
    %v666 = vmul.f32 %v664, %v540
    %668 = vrot.lane.b32.xlu0 %v665, 64
    %v669 = vpop.permute.xlu0 %668
    %v671 = vmul.f32 %v664, %v669
    %673 = vrot.lane.b32.xlu0 %v671, 32
    %v674 = vpop.permute.xlu0 %673
    %v676 = vadd.f32 %v666, %v674
    %v677 = vtanh.pop %v676
    %679 = vrot.lane.b32.xlu0 %v677, 64
    %v680 = vpop.permute.xlu0 %679
    %v682 = vmul.f32 %v664, %v680
    %683 = vmatpush.bf16.msra.mxu0 0
    %684 = vmatpush.bf16.msra.mxu0 0
    %685 = vmatpush.bf16.msra.mxu0 0
    %686 = vmatpush.bf16.msra.mxu0 0
    %687 = vmatpush.bf16.msra.mxu0 0
    %688 = vmatpush.bf16.msra.mxu0 0
    %689 = vmatpush.bf16.msra.mxu0 %v119
    %690 = vmatpush.bf16.msra.mxu0 %v118
    %691 = vmatmul.bf16.gmra.mxu0 %v610
    %v692 = vpop.f32.mrf.mxu0
    %v693 = vadd.f32 0.0, %v692
    %v694 = vpop.f32.mrf.mxu0
    %695 = vdwg.mxu0
    %v696 = vadd.f32 %v95, %v693
    %v697 = vxor.u32 %v696, 2147483648
    %v698 = vmul.f32 %v697, 1.442695
    %v699 = vpow.pop %v698
    %v700 = vadd.f32 %v699, 1.0
    %v701 = vrcp.pop %v700
    %v702 = vmul.f32 %v700, %v701
    %v703 = vsub.f32 1.0, %v702
    %v704 = vmul.f32 %v701, %v703
    %v705 = vadd.f32 %v701, %v704
    %vm706 = vweird.f32 %v700
    %vm707 = vweird.f32 %v701
    %vm708 = vmor %vm706, %vm707
    %v709 = vsel %vm708, %v701, %v705
    %v710 = vand.u32 2147483647, %v700
    %vm711 = vcmp.eq.f32.partialorder %v710, 8.507059e+37
    %v712 = vand.u32 %v700, 2147483648
    %v713 = vor.u32 1.1754944e-38, %v712
    %v714 = vsel %vm711, %v713, %v709
    %v715 = vmul.f32 1.0, %v714
    %v716 = vtanh.pop %v696
    %v718 = vrot.slane %v597, 6
    %v720 = vmul.f32 %v715, %v718
    %722 = vrot.lane.b32.xlu0 %v716, 64
    %v723 = vpop.permute.xlu0 %722
    %v725 = vmul.f32 %v715, %v723
    %727 = vrot.lane.b32.xlu0 %v725, 32
    %v728 = vpop.permute.xlu0 %727
    %v730 = vadd.f32 %v720, %v728
    %v731 = vtanh.pop %v730
    %733 = vrot.lane.b32.xlu0 %v731, 64
    %v734 = vpop.permute.xlu0 %733
    %v736 = vmul.f32 %v715, %v734
    %v737 = vpack.c.bf16 %v736, %v736
    %739 = vrot.lane.b32.xlu0 %v737, 32
    %v740 = vpop.permute.xlu0 %739
    %v742 = vsel %vm122, %v740, 0
    %744 = vmatpush.bf16.msra.mxu0 0
    %745 = vmatpush.bf16.msra.mxu0 0
    %746 = vmatpush.bf16.msra.mxu0 0
    %747 = vmatpush.bf16.msra.mxu0 0
    %748 = vmatpush.bf16.msra.mxu0 0
    %749 = vmatpush.bf16.msra.mxu0 0
    %750 = vmatpush.bf16.msra.mxu0 %v193
    %751 = vmatpush.bf16.msra.mxu0 %v192
    %752 = vmatmul.bf16.gmra.mxu0 %v742
    %v753 = vpop.f32.mrf.mxu0
    %v754 = vadd.f32 %v179, %v753
    %v755 = vpop.f32.mrf.mxu0
    %756 = vdwg.mxu0
    %v757 = vpack.c.bf16 %v682, %v682
    %759 = vrot.lane.b32.xlu0 %v757, 32
    %v760 = vpop.permute.xlu0 %759
    %v762 = vsel %vm122, %v760, 0
    %764 = vmatpush.bf16.msra.mxu0 0
    %765 = vmatpush.bf16.msra.mxu0 0
    %766 = vmatpush.bf16.msra.mxu0 0
    %767 = vmatpush.bf16.msra.mxu0 0
    %768 = vmatpush.bf16.msra.mxu0 0
    %769 = vmatpush.bf16.msra.mxu0 0
    %770 = vmatpush.bf16.msra.mxu0 %v221
    %771 = vmatpush.bf16.msra.mxu0 %v220
    %772 = vmatmul.bf16.gmra.mxu0 %v762
    %v773 = vpop.f32.mrf.mxu0
    %v774 = vadd.f32 0.0, %v773
    %v775 = vpop.f32.mrf.mxu0
    %776 = vdwg.mxu0
    %v777 = vadd.f32 %v754, %v774
    %v778 = vxor.u32 %v777, 2147483648
    %v779 = vmul.f32 %v778, 1.442695
    %v780 = vpow.pop %v779
    %v781 = vadd.f32 %v780, 1.0
    %v782 = vrcp.pop %v781
    %v783 = vmul.f32 %v781, %v782
    %v784 = vsub.f32 1.0, %v783
    %v785 = vmul.f32 %v782, %v784
    %v786 = vadd.f32 %v782, %v785
    %vm787 = vweird.f32 %v781
    %vm788 = vweird.f32 %v782
    %vm789 = vmor %vm787, %vm788
    %v790 = vsel %vm789, %v782, %v786
    %v791 = vand.u32 2147483647, %v781
    %vm792 = vcmp.eq.f32.partialorder %v791, 8.507059e+37
    %v793 = vand.u32 %v781, 2147483648
    %v794 = vor.u32 1.1754944e-38, %v793
    %v795 = vsel %vm792, %v794, %v790
    %v796 = vmul.f32 1.0, %v795
    %v797 = vtanh.pop %v777
    %v798 = vmul.f32 %v796, %v676
    %800 = vrot.lane.b32.xlu0 %v797, 64
    %v801 = vpop.permute.xlu0 %800
    %v803 = vmul.f32 %v796, %v801
    %805 = vrot.lane.b32.xlu0 %v803, 32
    %v806 = vpop.permute.xlu0 %805
    %v808 = vadd.f32 %v798, %v806
    %v809 = vtanh.pop %v808
    %811 = vrot.lane.b32.xlu0 %v809, 64
    %v812 = vpop.permute.xlu0 %811
    %v814 = vmul.f32 %v796, %v812
    %815 = vmatpush.bf16.msra.mxu0 0
    %816 = vmatpush.bf16.msra.mxu0 0
    %817 = vmatpush.bf16.msra.mxu0 0
    %818 = vmatpush.bf16.msra.mxu0 0
    %819 = vmatpush.bf16.msra.mxu0 0
    %820 = vmatpush.bf16.msra.mxu0 0
    %821 = vmatpush.bf16.msra.mxu0 %v119
    %822 = vmatpush.bf16.msra.mxu0 %v118
    %823 = vmatmul.bf16.gmra.mxu0 %v742
    %v824 = vpop.f32.mrf.mxu0
    %v825 = vadd.f32 0.0, %v824
    %v826 = vpop.f32.mrf.mxu0
    %827 = vdwg.mxu0
    %v829 = vrot.slane %v825, 6
    %v831 = vadd.f32 %v95, %v829
    %v832 = vxor.u32 %v831, 2147483648
    %v833 = vmul.f32 %v832, 1.442695
    %v834 = vpow.pop %v833
    %v835 = vadd.f32 %v834, 1.0
    %v836 = vrcp.pop %v835
    %v837 = vmul.f32 %v835, %v836
    %v838 = vsub.f32 1.0, %v837
    %v839 = vmul.f32 %v836, %v838
    %v840 = vadd.f32 %v836, %v839
    %vm841 = vweird.f32 %v835
    %vm842 = vweird.f32 %v836
    %vm843 = vmor %vm841, %vm842
    %v844 = vsel %vm843, %v836, %v840
    %v845 = vand.u32 2147483647, %v835
    %vm846 = vcmp.eq.f32.partialorder %v845, 8.507059e+37
    %v847 = vand.u32 %v835, 2147483648
    %v848 = vor.u32 1.1754944e-38, %v847
    %v849 = vsel %vm846, %v848, %v844
    %v850 = vmul.f32 1.0, %v849
    %v851 = vtanh.pop %v831
    %v853 = vrot.slane %v730, 6
    %v855 = vmul.f32 %v850, %v853
    %857 = vrot.lane.b32.xlu0 %v851, 64
    %v858 = vpop.permute.xlu0 %857
    %v860 = vmul.f32 %v850, %v858
    %862 = vrot.lane.b32.xlu0 %v860, 32
    %v863 = vpop.permute.xlu0 %862
    %v865 = vadd.f32 %v855, %v863
    %v866 = vtanh.pop %v865
    %868 = vrot.lane.b32.xlu0 %v866, 64
    %v869 = vpop.permute.xlu0 %868
    %v871 = vmul.f32 %v850, %v869
    %v872 = vpack.c.bf16 %v871, %v871
    %v874 = vrot.slane %v872, 1
    %875 = vrot.lane.b32.xlu0 %v874, 32
    %v876 = vpop.permute.xlu0 %875
    %v878 = vsel %vm122, %v876, 0
    %880 = vmatpush.bf16.msra.mxu0 0
    %881 = vmatpush.bf16.msra.mxu0 0
    %882 = vmatpush.bf16.msra.mxu0 0
    %883 = vmatpush.bf16.msra.mxu0 0
    %884 = vmatpush.bf16.msra.mxu0 0
    %885 = vmatpush.bf16.msra.mxu0 0
    %886 = vmatpush.bf16.msra.mxu0 %v193
    %887 = vmatpush.bf16.msra.mxu0 %v192
    %888 = vmatmul.bf16.gmra.mxu0 %v878
    %v889 = vpop.f32.mrf.mxu0
    %v890 = vadd.f32 %v179, %v889
    %v891 = vpop.f32.mrf.mxu0
    %892 = vdwg.mxu0
    %v893 = vpack.c.bf16 %v814, %v814
    %895 = vrot.lane.b32.xlu0 %v893, 32
    %v896 = vpop.permute.xlu0 %895
    %v898 = vsel %vm122, %v896, 0
    %900 = vmatpush.bf16.msra.mxu0 0
    %901 = vmatpush.bf16.msra.mxu0 0
    %902 = vmatpush.bf16.msra.mxu0 0
    %903 = vmatpush.bf16.msra.mxu0 0
    %904 = vmatpush.bf16.msra.mxu0 0
    %905 = vmatpush.bf16.msra.mxu0 0
    %906 = vmatpush.bf16.msra.mxu0 %v221
    %907 = vmatpush.bf16.msra.mxu0 %v220
    %908 = vmatmul.bf16.gmra.mxu0 %v898
    %v909 = vpop.f32.mrf.mxu0
    %v910 = vadd.f32 0.0, %v909
    %v911 = vpop.f32.mrf.mxu0
    %912 = vdwg.mxu0
    %v913 = vadd.f32 %v890, %v910
    %v914 = vxor.u32 %v913, 2147483648
    %v915 = vmul.f32 %v914, 1.442695
    %v916 = vpow.pop %v915
    %v917 = vadd.f32 %v916, 1.0
    %v918 = vrcp.pop %v917
    %v919 = vmul.f32 %v917, %v918
    %v920 = vsub.f32 1.0, %v919
    %v921 = vmul.f32 %v918, %v920
    %v922 = vadd.f32 %v918, %v921
    %vm923 = vweird.f32 %v917
    %vm924 = vweird.f32 %v918
    %vm925 = vmor %vm923, %vm924
    %v926 = vsel %vm925, %v918, %v922
    %v927 = vand.u32 2147483647, %v917
    %vm928 = vcmp.eq.f32.partialorder %v927, 8.507059e+37
    %v929 = vand.u32 %v917, 2147483648
    %v930 = vor.u32 1.1754944e-38, %v929
    %v931 = vsel %vm928, %v930, %v926
    %v932 = vmul.f32 1.0, %v931
    %v933 = vtanh.pop %v913
    %v934 = vmul.f32 %v932, %v808
    %936 = vrot.lane.b32.xlu0 %v933, 64
    %v937 = vpop.permute.xlu0 %936
    %v939 = vmul.f32 %v932, %v937
    %941 = vrot.lane.b32.xlu0 %v939, 32
    %v942 = vpop.permute.xlu0 %941
    %v944 = vadd.f32 %v934, %v942
    %v945 = vtanh.pop %v944
    %947 = vrot.lane.b32.xlu0 %v945, 64
    %v948 = vpop.permute.xlu0 %947
    %v950 = vmul.f32 %v932, %v948
    %951 = vmatpush.bf16.msra.mxu0 0
    %952 = vmatpush.bf16.msra.mxu0 0
    %953 = vmatpush.bf16.msra.mxu0 0
    %954 = vmatpush.bf16.msra.mxu0 0
    %955 = vmatpush.bf16.msra.mxu0 0
    %956 = vmatpush.bf16.msra.mxu0 0
    %957 = vmatpush.bf16.msra.mxu0 %v119
    %958 = vmatpush.bf16.msra.mxu0 %v118
    %959 = vmatmul.bf16.gmra.mxu0 %v878
    %v960 = vpop.f32.mrf.mxu0
    %v961 = vadd.f32 0.0, %v960
    %v962 = vpop.f32.mrf.mxu0
    %963 = vdwg.mxu0
    %v965 = vrot.slane %v961, 4
    %v967 = vadd.f32 %v95, %v965
    %v968 = vxor.u32 %v967, 2147483648
    %v969 = vmul.f32 %v968, 1.442695
    %v970 = vpow.pop %v969
    %v971 = vadd.f32 %v970, 1.0
    %v972 = vrcp.pop %v971
    %v973 = vmul.f32 %v971, %v972
    %v974 = vsub.f32 1.0, %v973
    %v975 = vmul.f32 %v972, %v974
    %v976 = vadd.f32 %v972, %v975
    %vm977 = vweird.f32 %v971
    %vm978 = vweird.f32 %v972
    %vm979 = vmor %vm977, %vm978
    %v980 = vsel %vm979, %v972, %v976
    %v981 = vand.u32 2147483647, %v971
    %vm982 = vcmp.eq.f32.partialorder %v981, 8.507059e+37
    %v983 = vand.u32 %v971, 2147483648
    %v984 = vor.u32 1.1754944e-38, %v983
    %v985 = vsel %vm982, %v984, %v980
    %v986 = vmul.f32 1.0, %v985
    %v987 = vtanh.pop %v967
    %v989 = vrot.slane %v865, 6
    %v991 = vmul.f32 %v986, %v989
    %993 = vrot.lane.b32.xlu0 %v987, 64
    %v994 = vpop.permute.xlu0 %993
    %v996 = vmul.f32 %v986, %v994
    %998 = vrot.lane.b32.xlu0 %v996, 32
    %v999 = vpop.permute.xlu0 %998
    %v1001 = vadd.f32 %v991, %v999
    %v1002 = vtanh.pop %v1001
    %1004 = vrot.lane.b32.xlu0 %v1002, 64
    %v1005 = vpop.permute.xlu0 %1004
    %v1007 = vmul.f32 %v986, %v1005
    %v1008 = vpack.c.bf16 %v1007, %v1007
    %v1010 = vrot.slane %v1008, 2
    %1011 = vrot.lane.b32.xlu0 %v1010, 32
    %v1012 = vpop.permute.xlu0 %1011
    %v1014 = vsel %vm122, %v1012, 0
    %1016 = vmatpush.bf16.msra.mxu0 0
    %1017 = vmatpush.bf16.msra.mxu0 0
    %1018 = vmatpush.bf16.msra.mxu0 0
    %1019 = vmatpush.bf16.msra.mxu0 0
    %1020 = vmatpush.bf16.msra.mxu0 0
    %1021 = vmatpush.bf16.msra.mxu0 0
    %1022 = vmatpush.bf16.msra.mxu0 %v193
    %1023 = vmatpush.bf16.msra.mxu0 %v192
    %1024 = vmatmul.bf16.gmra.mxu0 %v1014
    %v1025 = vpop.f32.mrf.mxu0
    %v1026 = vadd.f32 %v179, %v1025
    %v1027 = vpop.f32.mrf.mxu0
    %1028 = vdwg.mxu0
    %v1029 = vpack.c.bf16 %v950, %v950
    %1031 = vrot.lane.b32.xlu0 %v1029, 32
    %v1032 = vpop.permute.xlu0 %1031
    %v1034 = vsel %vm122, %v1032, 0
    %1036 = vmatpush.bf16.msra.mxu0 0
    %1037 = vmatpush.bf16.msra.mxu0 0
    %1038 = vmatpush.bf16.msra.mxu0 0
    %1039 = vmatpush.bf16.msra.mxu0 0
    %1040 = vmatpush.bf16.msra.mxu0 0
    %1041 = vmatpush.bf16.msra.mxu0 0
    %1042 = vmatpush.bf16.msra.mxu0 %v221
    %1043 = vmatpush.bf16.msra.mxu0 %v220
    %1044 = vmatmul.bf16.gmra.mxu0 %v1034
    %v1045 = vpop.f32.mrf.mxu0
    %v1046 = vadd.f32 0.0, %v1045
    %v1047 = vpop.f32.mrf.mxu0
    %1048 = vdwg.mxu0
    %v1049 = vadd.f32 %v1026, %v1046
    %v1050 = vxor.u32 %v1049, 2147483648
    %v1051 = vmul.f32 %v1050, 1.442695
    %v1052 = vpow.pop %v1051
    %v1053 = vadd.f32 %v1052, 1.0
    %v1054 = vrcp.pop %v1053
    %v1055 = vmul.f32 %v1053, %v1054
    %v1056 = vsub.f32 1.0, %v1055
    %v1057 = vmul.f32 %v1054, %v1056
    %v1058 = vadd.f32 %v1054, %v1057
    %vm1059 = vweird.f32 %v1053
    %vm1060 = vweird.f32 %v1054
    %vm1061 = vmor %vm1059, %vm1060
    %v1062 = vsel %vm1061, %v1054, %v1058
    %v1063 = vand.u32 2147483647, %v1053
    %vm1064 = vcmp.eq.f32.partialorder %v1063, 8.507059e+37
    %v1065 = vand.u32 %v1053, 2147483648
    %v1066 = vor.u32 1.1754944e-38, %v1065
    %v1067 = vsel %vm1064, %v1066, %v1062
    %v1068 = vmul.f32 1.0, %v1067
    %v1069 = vtanh.pop %v1049
    %v1070 = vmul.f32 %v1068, %v944
    %1072 = vrot.lane.b32.xlu0 %v1069, 64
    %v1073 = vpop.permute.xlu0 %1072
    %v1075 = vmul.f32 %v1068, %v1073
    %1077 = vrot.lane.b32.xlu0 %v1075, 32
    %v1078 = vpop.permute.xlu0 %1077
    %v1080 = vadd.f32 %v1070, %v1078
    %v1081 = vtanh.pop %v1080
    %1083 = vrot.lane.b32.xlu0 %v1081, 64
    %v1084 = vpop.permute.xlu0 %1083
    %v1086 = vmul.f32 %v1068, %v1084
    %1087 = vmatpush.bf16.msra.mxu0 0
    %1088 = vmatpush.bf16.msra.mxu0 0
    %1089 = vmatpush.bf16.msra.mxu0 0
    %1090 = vmatpush.bf16.msra.mxu0 0
    %1091 = vmatpush.bf16.msra.mxu0 0
    %1092 = vmatpush.bf16.msra.mxu0 0
    %1093 = vmatpush.bf16.msra.mxu0 %v119
    %1094 = vmatpush.bf16.msra.mxu0 %v118
    %1095 = vmatmul.bf16.gmra.mxu0 %v1014
    %v1096 = vpop.f32.mrf.mxu0
    %v1097 = vadd.f32 0.0, %v1096
    %v1098 = vpop.f32.mrf.mxu0
    %1099 = vdwg.mxu0
    %v1101 = vrot.slane %v1097, 2
    %v1103 = vadd.f32 %v95, %v1101
    %v1104 = vxor.u32 %v1103, 2147483648
    %v1105 = vmul.f32 %v1104, 1.442695
    %v1106 = vpow.pop %v1105
    %v1107 = vadd.f32 %v1106, 1.0
    %v1108 = vrcp.pop %v1107
    %v1109 = vmul.f32 %v1107, %v1108
    %v1110 = vsub.f32 1.0, %v1109
    %v1111 = vmul.f32 %v1108, %v1110
    %v1112 = vadd.f32 %v1108, %v1111
    %vm1113 = vweird.f32 %v1107
    %vm1114 = vweird.f32 %v1108
    %vm1115 = vmor %vm1113, %vm1114
    %v1116 = vsel %vm1115, %v1108, %v1112
    %v1117 = vand.u32 2147483647, %v1107
    %vm1118 = vcmp.eq.f32.partialorder %v1117, 8.507059e+37
    %v1119 = vand.u32 %v1107, 2147483648
    %v1120 = vor.u32 1.1754944e-38, %v1119
    %v1121 = vsel %vm1118, %v1120, %v1116
    %v1122 = vmul.f32 1.0, %v1121
    %v1123 = vtanh.pop %v1103
    %v1125 = vrot.slane %v1001, 6
    %v1127 = vmul.f32 %v1122, %v1125
    %1129 = vrot.lane.b32.xlu0 %v1123, 64
    %v1130 = vpop.permute.xlu0 %1129
    %v1132 = vmul.f32 %v1122, %v1130
    %1134 = vrot.lane.b32.xlu0 %v1132, 32
    %v1135 = vpop.permute.xlu0 %1134
    %v1137 = vadd.f32 %v1127, %v1135
    %v1138 = vtanh.pop %v1137
    %1140 = vrot.lane.b32.xlu0 %v1138, 64
    %v1141 = vpop.permute.xlu0 %1140
    %v1143 = vmul.f32 %v1122, %v1141
    %v1144 = vpack.c.bf16 %v1143, %v1143
    %v1146 = vrot.slane %v1144, 3
    %1147 = vrot.lane.b32.xlu0 %v1146, 32
    %v1148 = vpop.permute.xlu0 %1147
    %v1150 = vsel %vm122, %v1148, 0
    %1152 = vmatpush.bf16.msra.mxu0 0
    %1153 = vmatpush.bf16.msra.mxu0 0
    %1154 = vmatpush.bf16.msra.mxu0 0
    %1155 = vmatpush.bf16.msra.mxu0 0
    %1156 = vmatpush.bf16.msra.mxu0 0
    %1157 = vmatpush.bf16.msra.mxu0 0
    %1158 = vmatpush.bf16.msra.mxu0 %v193
    %1159 = vmatpush.bf16.msra.mxu0 %v192
    %1160 = vmatmul.bf16.gmra.mxu0 %v1150
    %v1161 = vpop.f32.mrf.mxu0
    %v1162 = vadd.f32 %v179, %v1161
    %v1163 = vpop.f32.mrf.mxu0
    %1164 = vdwg.mxu0
    %v1165 = vpack.c.bf16 %v1086, %v1086
    %1167 = vrot.lane.b32.xlu0 %v1165, 32
    %v1168 = vpop.permute.xlu0 %1167
    %v1170 = vsel %vm122, %v1168, 0
    %1172 = vmatpush.bf16.msra.mxu0 0
    %1173 = vmatpush.bf16.msra.mxu0 0
    %1174 = vmatpush.bf16.msra.mxu0 0
    %1175 = vmatpush.bf16.msra.mxu0 0
    %1176 = vmatpush.bf16.msra.mxu0 0
    %1177 = vmatpush.bf16.msra.mxu0 0
    %1178 = vmatpush.bf16.msra.mxu0 %v221
    %1179 = vmatpush.bf16.msra.mxu0 %v220
    %1180 = vmatmul.bf16.gmra.mxu0 %v1170
    %v1181 = vpop.f32.mrf.mxu0
    %v1182 = vadd.f32 0.0, %v1181
    %v1183 = vpop.f32.mrf.mxu0
    %1184 = vdwg.mxu0
    %v1185 = vadd.f32 %v1162, %v1182
    %v1186 = vxor.u32 %v1185, 2147483648
    %v1187 = vmul.f32 %v1186, 1.442695
    %v1188 = vpow.pop %v1187
    %v1189 = vadd.f32 %v1188, 1.0
    %v1190 = vrcp.pop %v1189
    %v1191 = vmul.f32 %v1189, %v1190
    %v1192 = vsub.f32 1.0, %v1191
    %v1193 = vmul.f32 %v1190, %v1192
    %v1194 = vadd.f32 %v1190, %v1193
    %vm1195 = vweird.f32 %v1189
    %vm1196 = vweird.f32 %v1190
    %vm1197 = vmor %vm1195, %vm1196
    %v1198 = vsel %vm1197, %v1190, %v1194
    %v1199 = vand.u32 2147483647, %v1189
    %vm1200 = vcmp.eq.f32.partialorder %v1199, 8.507059e+37
    %v1201 = vand.u32 %v1189, 2147483648
    %v1202 = vor.u32 1.1754944e-38, %v1201
    %v1203 = vsel %vm1200, %v1202, %v1198
    %v1204 = vmul.f32 1.0, %v1203
    %v1205 = vtanh.pop %v1185
    %v1206 = vmul.f32 %v1204, %v1080
    %1208 = vrot.lane.b32.xlu0 %v1205, 64
    %v1209 = vpop.permute.xlu0 %1208
    %v1211 = vmul.f32 %v1204, %v1209
    %1213 = vrot.lane.b32.xlu0 %v1211, 32
    %v1214 = vpop.permute.xlu0 %1213
    %v1216 = vadd.f32 %v1206, %v1214
    %v1217 = vtanh.pop %v1216
    %1219 = vrot.lane.b32.xlu0 %v1217, 64
    %v1220 = vpop.permute.xlu0 %1219
    %v1222 = vmul.f32 %v1204, %v1220
    %v1223 = vld [vmem:[%s7] sm:$0x1]
    %v1225 = vperm.slane %v1223, 0
    %1226 = vrot.lane.b32.xlu0 %v1225, 96
    %v1227 = vpop.permute.xlu0 %1226
    %v1229 = vmul.f32 %v1222, %v1227
    %1231 = vrot.lane.b32.xlu0 %v1229, 32
    %v1232 = vpop.permute.xlu0 %1231
    %vm1234 = vcmask 254976
    %v1235 = vsel %vm1234, %v1232, 0.0
    %1236 = vadd.xlane.f32.xlu0 %v1235
    %v1237 = vpop.xlane.xlu0 %1236
    %v1238 = vld [vmem:[#allocation2] sm:$0x1]
    %v1240 = vperm.slane %v1238, 0
    %v1242 = vadd.f32 %v1237, %v1240
    %vm1243 = vcmask 1024
    %1244 = vst.msk [vmem:[%s9] sm:$0x3] %vm1243, %v1242
    // Predicated region
    $region46: #{tpu_custom_call.1} parent=1 // pred_check
      _
    $region47: #{tpu_custom_call.1} parent=1 // pred_check_branch
      %1246 = sbr.rel (0) target = $region49
    $region48: #{tpu_custom_call.1} parent=1 // pred_region
      _
    $region49: #{tpu_custom_call.1} parent=1 // pred_fallthru
      _
    // Predicated region
    $region50: #{tpu_custom_call.1} parent=1 // pred_check
      _
    $region51: #{tpu_custom_call.1} parent=1 // pred_check_branch
      %1248 = sbr.rel (0) target = $region53
    $region52: #{tpu_custom_call.1} parent=1 // pred_region
      _
    $region53: #{tpu_custom_call.1} parent=1 // pred_fallthru
      _
    %1249 = vsyncpa [#allocation4], 1
    %1250 = vsyncpa [#allocation6], 1

</llo_original>
